<compile_context>
chip_gen: v7x
topology: tpu7x:2x2x1
jax: 0.10.0
libtpu: 0.0.40
codegen_flags: <defaults>
</compile_context>

<pallas_src>
import functools
import math

import jax
import jax.numpy as jnp
from jax.experimental import pallas as pl
from jax.experimental.pallas import tpu as pltpu

TIME_WINDOW = 5
THRESH = 0.5
DECAY = 0.25
BN_EPS = 1e-5
_STRIP = 64          # rows of recurrence state kept live at once (in vregs)


def _cdiv(a, b):
    return -(-a // b)


def _lane_width(c):
    # lcm(C, 128): with channel-last flattening, lane j <-> channel j % C.
    return (c * 128) // math.gcd(c, 128)


@functools.lru_cache(maxsize=1)
def _tile_budget():
    # (per-block streaming-bytes cap, max rows per block, vmem_limit_bytes)
    try:
        kind = jax.devices()[0].device_kind.lower()
    except Exception:  # pragma: no cover
        kind = ""
    if "v5" in kind or "v6" in kind:
        # 128 MiB physical VMEM: larger streaming tiles, fewer grid steps.
        return 6 * 1024 * 1024, 1024, 96 * 1024 * 1024
    # v7x (64 MiB physical, 2 TCs) or unknown: keep the footprint small.
    return 2 * 1024 * 1024, 512, None


def _row_block(rows, bytes_per_row, cap_bytes, max_rows):
    # Multiple of 16 (bf16 tiles); multiple of 64 when large so the in-kernel
    # 64-row strip loop divides the block evenly.
    rb = max(16, min(max(rows, 16), cap_bytes // max(bytes_per_row, 1), max_rows))
    if rb >= 64:
        rb = (rb // 64) * 64
    else:
        rb = max(16, (rb // 16) * 16)
    return rb


def _cparams(semantics):
    _, _, vmem_limit = _tile_budget()
    return pltpu.CompilerParams(dimension_semantics=semantics,
                                vmem_limit_bytes=vmem_limit)


# ----------------------------------------------------------------------------
# Pallas kernels
# ----------------------------------------------------------------------------
def _mem_update_kernel(x_ref, o_ref):
    # x_ref: (T, rb, LANE) f32; o_ref: (T, rb, LANE) bf16 spikes.
    rb = x_ref.shape[1]
    strip = _STRIP if rb % _STRIP == 0 else rb
    n_strips = rb // strip

    @pl.loop(0, n_strips)
    def _(s):
        r0 = pl.multiple_of(s * strip, 8)
        rows = pl.ds(r0, strip)
        mem = x_ref[0, rows, :]
        gt = mem > THRESH
        o_ref[0, rows, :] = gt.astype(jnp.bfloat16)
        for i in range(1, TIME_WINDOW):
            mem = jnp.where(gt, 0.0, mem * DECAY) + x_ref[i, rows, :]
            gt = mem > THRESH
            o_ref[i, rows, :] = gt.astype(jnp.bfloat16)


def _bn_mem_update_kernel(x_ref, s_ref, b_ref, o_ref):
    # Fused BN scale/shift (periodic per-lane channel pattern) + spiking
    # recurrence; the f32 conv output is read from HBM exactly once and the
    # spikes are written back in bf16.
    scale = s_ref[...]          # (1, LANE)
    shift = b_ref[...]          # (1, LANE)
    rb = x_ref.shape[1]
    strip = _STRIP if rb % _STRIP == 0 else rb
    n_strips = rb // strip

    @pl.loop(0, n_strips)
    def _(s):
        r0 = pl.multiple_of(s * strip, 8)
        rows = pl.ds(r0, strip)
        mem = x_ref[0, rows, :] * scale + shift
        gt = mem > THRESH
        o_ref[0, rows, :] = gt.astype(jnp.bfloat16)
        for i in range(1, TIME_WINDOW):
            mem = (jnp.where(gt, 0.0, mem * DECAY)
                   + (x_ref[i, rows, :] * scale + shift))
            gt = mem > THRESH
            o_ref[i, rows, :] = gt.astype(jnp.bfloat16)


def _bn_stats_kernel(x_ref, sum_ref, sq_ref):
    # Per-lane sum / sum-of-squares accumulated directly into the resident
    # (1, 8, LANE) partition outputs (no scratch, pl.when init on first step).
    i = pl.program_id(1)

    @pl.when(i == 0)
    def _():
        sum_ref[...] = jnp.zeros_like(sum_ref)
        sq_ref[...] = jnp.zeros_like(sq_ref)

    x = x_ref[...]
    rb, lane = x.shape
    xg = x.reshape(rb // 8, 8, lane)          # tile-aligned split of the sublane dim
    sum_ref[0] += jnp.sum(xg, axis=0)
    sq_ref[0] += jnp.sum(xg * xg, axis=0)


def _dual_bn_add_kernel(a_ref, b_ref, sa_ref, oa_ref, sb_ref, ob_ref, o_ref):
    # out = BN_a(a) + BN_b(b)  (identity shortcut passes sb=1, ob=0).
    o_ref[...] = (a_ref[...] * sa_ref[...] + oa_ref[...]
                  + b_ref[...] * sb_ref[...] + ob_ref[...])


# ----------------------------------------------------------------------------
# Wrappers
# ----------------------------------------------------------------------------
def mem_update(x):
    # x: (T, ...) float32 -> bf16 spikes of the same shape (elementwise in
    # space, recurrent in time; layout-agnostic so LANE=128).
    T = x.shape[0]
    P = int(math.prod(x.shape[1:]))
    LANE = 128
    cap, max_rows, _ = _tile_budget()
    rows = _cdiv(P, LANE)
    rb = _row_block(rows, T * LANE * (4 + 2), cap, max_rows)
    rows_pad = _cdiv(rows, rb) * rb
    padded = rows_pad * LANE != P

    xf = x.reshape(T, P)
    if padded:
        xf = jnp.pad(xf, ((0, 0), (0, rows_pad * LANE - P)))
    xf = xf.reshape(T, rows_pad, LANE)

    out = pl.pallas_call(
        _mem_update_kernel,
        out_shape=jax.ShapeDtypeStruct((T, rows_pad, LANE), jnp.bfloat16),
        grid=(rows_pad // rb,),
        in_specs=[pl.BlockSpec((T, rb, LANE), lambda i: (0, i, 0))],
        out_specs=pl.BlockSpec((T, rb, LANE), lambda i: (0, i, 0)),
        compiler_params=_cparams(("parallel",)),
    )(xf)
    if padded:
        out = out.reshape(T, rows_pad * LANE)[:, :P]
    return out.reshape((T,) + x.shape[1:])


def bn_mem_update(y, scale_c, shift_c):
    # y: (T, ..., C) channel-last f32 conv output.  Fused BN-apply + mem_update
    # -> bf16 spikes.
    T = y.shape[0]
    C = y.shape[-1]
    P = int(math.prod(y.shape[1:]))
    LANE = _lane_width(C)
    cap, max_rows, _ = _tile_budget()
    rows = _cdiv(P, LANE)
    rb = _row_block(rows, T * LANE * (4 + 2), cap, max_rows)
    rows_pad = _cdiv(rows, rb) * rb
    padded = rows_pad * LANE != P

    yf = y.reshape(T, P)
    if padded:
        yf = jnp.pad(yf, ((0, 0), (0, rows_pad * LANE - P)))
    yf = yf.reshape(T, rows_pad, LANE)
    s_l = jnp.tile(scale_c.astype(jnp.float32), LANE // C).reshape(1, LANE)
    b_l = jnp.tile(shift_c.astype(jnp.float32), LANE // C).reshape(1, LANE)

    out = pl.pallas_call(
        _bn_mem_update_kernel,
        out_shape=jax.ShapeDtypeStruct((T, rows_pad, LANE), jnp.bfloat16),
        grid=(rows_pad // rb,),
        in_specs=[pl.BlockSpec((T, rb, LANE), lambda i: (0, i, 0)),
                  pl.BlockSpec((1, LANE), lambda i: (0, 0)),
                  pl.BlockSpec((1, LANE), lambda i: (0, 0))],
        out_specs=pl.BlockSpec((T, rb, LANE), lambda i: (0, i, 0)),
        compiler_params=_cparams(("parallel",)),
    )(yf, s_l, b_l)
    if padded:
        out = out.reshape(T, rows_pad * LANE)[:, :P]
    return out.reshape(y.shape)


def bn_batch_stats(y):
    # y: (..., C) channel-last f32.  Per-channel (mean, biased var) from a
    # gridded Pallas sum / sum-of-squares accumulator.  The row range is split
    # across a leading "parallel" partition axis (both TCs on v7x); partial
    # sums are folded to channels outside.  Padded zero rows contribute 0.
    # TODO(synk): var = E[x^2] - mean^2 in f32; switch to a shifted/two-pass
    # accumulation if activation magnitudes ever grow large.
    C = y.shape[-1]
    P = int(y.size)
    LANE = _lane_width(C)
    cap, max_rows, _ = _tile_budget()
    rows = _cdiv(P, LANE)
    rb = _row_block(rows, LANE * 4, cap, max_rows)
    nblk = _cdiv(rows, rb)
    nparts = 2 if nblk >= 2 else 1
    steps = _cdiv(nblk, nparts)
    rows_pad = nparts * steps * rb
    padded = rows_pad * LANE != P

    yf = y.reshape(-1)
    if padded:
        yf = jnp.pad(yf, (0, rows_pad * LANE - P))
    yf = yf.reshape(rows_pad, LANE)

    part_sum, part_sq = pl.pallas_call(
        _bn_stats_kernel,
        out_shape=(jax.ShapeDtypeStruct((nparts, 8, LANE), jnp.float32),
                   jax.ShapeDtypeStruct((nparts, 8, LANE), jnp.float32)),
        grid=(nparts, steps),
        in_specs=[pl.BlockSpec((rb, LANE), lambda p, i: (p * steps + i, 0))],
        out_specs=(pl.BlockSpec((1, 8, LANE), lambda p, i: (p, 0, 0)),
                   pl.BlockSpec((1, 8, LANE), lambda p, i: (p, 0, 0))),
        compiler_params=_cparams(("parallel", "arbitrary")),
    )(yf)

    count = P // C
    ch_sum = part_sum.sum(axis=(0, 1)).reshape(LANE // C, C).sum(axis=0)
    ch_sq = part_sq.sum(axis=(0, 1)).reshape(LANE // C, C).sum(axis=0)
    mean = ch_sum / count
    var = jnp.maximum(ch_sq / count - mean * mean, 0.0)
    return mean, var


def bn_scale_shift(mean, var, gamma, beta):
    scale = gamma * jax.lax.rsqrt(var + BN_EPS)
    return scale, beta - mean * scale


def dual_bn_add(a, sa, oa, b, sb, ob, C):
    # out = (a*sa + oa) + (b*sb + ob): the final BN(s) fused with the residual
    # add.  a/b channel-last f32, output f32.
    shape = a.shape
    P = int(a.size)
    LANE = _lane_width(C)
    cap, max_rows, _ = _tile_budget()
    rows = _cdiv(P, LANE)
    rb = _row_block(rows, LANE * 4 * 3, cap, max_rows)
    rows_pad = _cdiv(rows, rb) * rb
    padded = rows_pad * LANE != P

    af = a.reshape(-1)
    bf = b.reshape(-1)
    if padded:
        pad = rows_pad * LANE - P
        af = jnp.pad(af, (0, pad))
        bf = jnp.pad(bf, (0, pad))
    af = af.reshape(rows_pad, LANE)
    bf = bf.reshape(rows_pad, LANE)

    def lanes(v):
        return jnp.tile(v.astype(jnp.float32), LANE // C).reshape(1, LANE)

    out = pl.pallas_call(
        _dual_bn_add_kernel,
        out_shape=jax.ShapeDtypeStruct((rows_pad, LANE), jnp.float32),
        grid=(rows_pad // rb,),
        in_specs=[pl.BlockSpec((rb, LANE), lambda i: (i, 0)),
                  pl.BlockSpec((rb, LANE), lambda i: (i, 0)),
                  pl.BlockSpec((1, LANE), lambda i: (0, 0)),
                  pl.BlockSpec((1, LANE), lambda i: (0, 0)),
                  pl.BlockSpec((1, LANE), lambda i: (0, 0)),
                  pl.BlockSpec((1, LANE), lambda i: (0, 0))],
        out_specs=pl.BlockSpec((rb, LANE), lambda i: (i, 0)),
        compiler_params=_cparams(("parallel",)),
    )(af, bf, lanes(sa), lanes(oa), lanes(sb), lanes(ob))
    if padded:
        out = out.reshape(-1)[:P]
    return out.reshape(shape)


# ----------------------------------------------------------------------------
# Conv / pool (XLA glue, per the perf review's im2col-elimination option)
# ----------------------------------------------------------------------------
def snn_conv2d(x, weight, stride, padding):
    # x: (T, N, H, W, Cin) channel-last bf16 spikes; weight: (Cout, Cin, k, k).
    # TODO(synk): conv GEMM delegated to XLA (NHWC lax.conv) — bf16 x bf16 MXU
    # with f32 accumulate; no Pallas tiling is lane-dense at C in {4, 8}.
    T, N, H, W, Cin = x.shape
    Cout = weight.shape[0]
    xb = x.astype(jnp.bfloat16).reshape(T * N, H, W, Cin)
    w_hwio = jnp.transpose(weight, (2, 3, 1, 0)).astype(jnp.bfloat16)  # OIHW->HWIO
    out = jax.lax.conv_general_dilated(
        xb, w_hwio, (stride, stride),
        [(padding, padding), (padding, padding)],
        dimension_numbers=("NHWC", "HWIO", "NHWC"),
        preferred_element_type=jnp.float32)
    return out.reshape(T, N, out.shape[1], out.shape[2], Cout)


def max_pool_spatial(x, s):
    # nn.MaxPool3d((1,s,s), stride=(1,s,s)) on channel-last (T,N,H,W,C).
    # TODO(synk): window-max kept as plain-JAX glue; fusing it into the
    # shortcut's mem_update would need non-lane-dense (H,W,C) blocks.
    if s == 1:
        return x
    T, N, H, W, C = x.shape
    return x.reshape(T, N, H // s, s, W // s, s, C).max(axis=(3, 5))


# ----------------------------------------------------------------------------
# BasicBlock_2
# ----------------------------------------------------------------------------
def init_params(key, in_channels, out_channels, k_size, stride):
    keys = jax.random.split(key, 3)

    def conv_init(k, cout, cin, ks):
        fan_in = cin * ks * ks
        bound = 1.0 / math.sqrt(fan_in)
        return jax.random.uniform(k, (cout, cin, ks, ks), jnp.float32, -bound, bound)

    params = {
        "conv1_w": conv_init(keys[0], out_channels, in_channels, k_size),
        "conv2_w": conv_init(keys[1], out_channels, out_channels, k_size),
        "bn1_w": jnp.full((out_channels,), THRESH, jnp.float32),        # BatchNorm3d1
        "bn1_b": jnp.zeros((out_channels,), jnp.float32),
        "bn2_w": jnp.full((out_channels,), 0.2 * THRESH, jnp.float32),  # BatchNorm3d2
        "bn2_b": jnp.zeros((out_channels,), jnp.float32),
    }
    if stride != 1 or in_channels != out_channels:
        params["sc_conv_w"] = conv_init(keys[2], out_channels, in_channels, 1)
        params["sc_bn_w"] = jnp.full((out_channels,), THRESH, jnp.float32)
        params["sc_bn_b"] = jnp.zeros((out_channels,), jnp.float32)
    return params


def basic_block_2(x, params, k_size, stride):
    # x: (T, N, C, H, W) at the module boundary (PyTorch layout).
    # TODO(synk): when blocks are stacked, keep NHWC across block boundaries
    # and drop these entry/exit transposes.
    pad = 1 if k_size == 3 else 0
    Cout = params["conv1_w"].shape[0]
    xcl = jnp.transpose(x, (0, 1, 3, 4, 2))          # channel-last, once

    # residual branch
    s1 = mem_update(xcl)                             # bf16 spikes
    y1 = snn_conv2d(s1, params["conv1_w"], stride, pad)      # f32
    m1, v1 = bn_batch_stats(y1)
    sc1, sh1 = bn_scale_shift(m1, v1, params["bn1_w"], params["bn1_b"])
    s2 = bn_mem_update(y1, sc1, sh1)                 # fused BN1 + mem_update (bf16)
    y2 = snn_conv2d(s2, params["conv2_w"], 1, pad)   # f32
    m2, v2 = bn_batch_stats(y2)
    sc2, sh2 = bn_scale_shift(m2, v2, params["bn2_w"], params["bn2_b"])

    # shortcut branch
    if "sc_conv_w" in params:
        p = max_pool_spatial(xcl, stride)
        sp = mem_update(p)
        ysc = snn_conv2d(sp, params["sc_conv_w"], 1, 0)
        ms, vs = bn_batch_stats(ysc)
        scs, shs = bn_scale_shift(ms, vs, params["sc_bn_w"], params["sc_bn_b"])
        out_cl = dual_bn_add(y2, sc2, sh2, ysc, scs, shs, Cout)   # BN2 + BN_sc + add
    else:
        one = jnp.ones((Cout,), jnp.float32)
        zero = jnp.zeros((Cout,), jnp.float32)
        out_cl = dual_bn_add(y2, sc2, sh2, xcl, one, zero, Cout)  # BN2 + identity add
    return jnp.transpose(out_cl, (0, 1, 4, 2, 3))


# ----------------------------------------------------------------------------
# Pure-JAX reference (no Pallas) for the sanity check.
# The reference pre-rounds the conv weights to bf16 (and computes everything
# else in f32) so the comparison isolates kernel correctness from the
# intentional mixed-precision policy; 0/1 spikes are exact in bf16, so this is
# the only precision difference the policy introduces.
# ----------------------------------------------------------------------------
def _bf16_round(w):
    return w.astype(jnp.bfloat16).astype(jnp.float32)


def _ref_mem_update(x):
    mem = x[0]
    spike = (mem > THRESH).astype(jnp.float32)
    outs = [spike]
    for i in range(1, TIME_WINDOW):
        mem = mem * DECAY * (1.0 - spike) + x[i]
        spike = (mem > THRESH).astype(jnp.float32)
        outs.append(spike)
    return jnp.stack(outs, 0)


def _ref_conv(x, w, stride, pad):
    T, N, Cin, H, W = x.shape
    xb = x.reshape(T * N, Cin, H, W)
    out = jax.lax.conv_general_dilated(
        xb, w, (stride, stride), [(pad, pad), (pad, pad)],
        dimension_numbers=("NCHW", "OIHW", "NCHW"))
    return out.reshape(T, N, w.shape[0], out.shape[2], out.shape[3])


def _ref_bn(x, w, b):
    mean = x.mean(axis=(0, 1, 3, 4), keepdims=True)
    var = ((x - mean) ** 2).mean(axis=(0, 1, 3, 4), keepdims=True)
    return ((x - mean) * jax.lax.rsqrt(var + BN_EPS) * w.reshape(1, 1, -1, 1, 1)
            + b.reshape(1, 1, -1, 1, 1))


def _ref_maxpool(x, s):
    if s == 1:
        return x
    T, N, C, H, W = x.shape
    return x.reshape(T, N, C, H // s, s, W // s, s).max(axis=(4, 6))


def _ref_basic_block_2(x, params, k_size, stride):
    pad = 1 if k_size == 3 else 0
    y = _ref_mem_update(x)
    y = _ref_conv(y, _bf16_round(params["conv1_w"]), stride, pad)
    y = _ref_bn(y, params["bn1_w"], params["bn1_b"])
    y = _ref_mem_update(y)
    y = _ref_conv(y, _bf16_round(params["conv2_w"]), 1, pad)
    y = _ref_bn(y, params["bn2_w"], params["bn2_b"])
    if "sc_conv_w" in params:
        s = _ref_maxpool(x, stride)
        s = _ref_mem_update(s)
        s = _ref_conv(s, _bf16_round(params["sc_conv_w"]), 1, 0)
        s = _ref_bn(s, params["sc_bn_w"], params["sc_bn_b"])
    else:
        s = x
    return y + s


# ----------------------------------------------------------------------------
if __name__ == "__main__":
    key = jax.random.PRNGKey(0)
    fwd = jax.jit(basic_block_2, static_argnums=(2, 3))
    ref_fwd = jax.jit(_ref_basic_block_2, static_argnums=(2, 3))

    configs = [
        # (N, Cin, Cout, H, W, k_size, stride)
        (2, 4, 8, 16, 16, 3, 2),   # non-identity (maxpool + 1x1 conv) shortcut
        (2, 8, 8, 16, 16, 3, 1),   # identity shortcut
    ]
    for (N, Cin, Cout, H, W, k_size, stride) in configs:
        k_x, k_p, key = jax.random.split(key, 3)
        x = jax.random.normal(k_x, (TIME_WINDOW, N, Cin, H, W), jnp.float32)
        params = init_params(k_p, Cin, Cout, k_size, stride)

        out = jax.block_until_ready(fwd(x, params, k_size, stride))
        ref = jax.block_until_ready(ref_fwd(x, params, k_size, stride))
        assert out.shape == ref.shape, (out.shape, ref.shape)

        # Spikes are hard 0.5 thresholds: values sitting exactly on the boundary
        # can flip between fp32 reduction orders, so allow a tiny mismatch
        # fraction rather than demanding bit-exactness.
        mismatch = float(jnp.mean((jnp.abs(out - ref) > 1e-3).astype(jnp.float32)))
        if mismatch > 0.01:
            raise RuntimeError(
                f"Pallas/ref mismatch fraction too high: {mismatch} "
                f"(config N={N} Cin={Cin} Cout={Cout} stride={stride})")

    print("KERNEL_OK")
</pallas_src>

<mosaic_0001>
module attributes {stable_mosaic.version = 11 : i64} {
  func.func @_mem_update_kernel(%arg0: i32, %arg1: memref<5x16x128xf32, #tpu.memory_space<vmem>>, %arg2: memref<5x16x128xbf16, #tpu.memory_space<vmem>>) attributes {dimension_semantics = [#tpu.dimension_semantics<parallel>], iteration_bounds = array<i64: 1>, scalar_prefetch = 0 : i64, scratch_operands = 0 : i64, tpu.core_type = #tpu.core_type<tc>, window_params = [{transform_indices = @transform_0, window_bounds = array<i64: 5, 16, 128>}, {transform_indices = @transform_1, window_bounds = array<i64: 5, 16, 128>}]} {
    %c0_i32 = arith.constant 0 : i32
    %c1_i32 = arith.constant 1 : i32
    %0 = arith.muli %c0_i32, %c1_i32 : i32
    %c0_i32_0 = arith.constant 0 : i32
    %1 = arith.addi %c0_i32_0, %0 : i32
    %c16_i32 = arith.constant 16 : i32
    %2 = arith.muli %1, %c16_i32 : i32
    %3 = tpu.assume_multiple %2, 8 : i32
    %c0 = arith.constant 0 : index
    %4 = arith.index_cast %3 : i32 to index
    %c0_1 = arith.constant 0 : index
    %5 = vector.load %arg1[%c0, %4, %c0_1] : memref<5x16x128xf32, #tpu.memory_space<vmem>>, vector<1x16x128xf32>
    %6 = vector.shape_cast %5 : vector<1x16x128xf32> to vector<16x128xf32>
    %cst = arith.constant 5.000000e-01 : f32
    %7 = vector.broadcast %cst : f32 to vector<16x128xf32>
    %8 = arith.cmpf ogt, %6, %7 : vector<16x128xf32>
    %9 = arith.extui %8 : vector<16x128xi1> to vector<16x128xi32>
    %10 = arith.sitofp %9 : vector<16x128xi32> to vector<16x128xf32>
    %11 = arith.truncf %10 : vector<16x128xf32> to vector<16x128xbf16>
    %c0_2 = arith.constant 0 : index
    %12 = arith.index_cast %3 : i32 to index
    %c0_3 = arith.constant 0 : index
    %13 = vector.load %arg2[%c0_2, %12, %c0_3] : memref<5x16x128xbf16, #tpu.memory_space<vmem>>, vector<1x16x128xbf16>
    %14 = vector.shape_cast %13 : vector<1x16x128xbf16> to vector<16x128xbf16>
    %15 = vector.shape_cast %11 : vector<16x128xbf16> to vector<1x16x128xbf16>
    tpu.vector_store %arg2[%c0_2, %12, %c0_3], %15 {strides = array<i32>} : memref<5x16x128xbf16, #tpu.memory_space<vmem>>, vector<1x16x128xbf16>,
    %cst_4 = arith.constant 2.500000e-01 : f32
    %16 = vector.broadcast %cst_4 : f32 to vector<16x128xf32>
    %17 = arith.mulf %6, %16 : vector<16x128xf32>
    %cst_5 = arith.constant 0.000000e+00 : f32
    %18 = vector.broadcast %cst_5 : f32 to vector<16x128xf32>
    %19 = arith.select %8, %18, %17 : vector<16x128xi1>, vector<16x128xf32>
    %c1 = arith.constant 1 : index
    %20 = arith.index_cast %3 : i32 to index
    %c0_6 = arith.constant 0 : index
    %21 = vector.load %arg1[%c1, %20, %c0_6] : memref<5x16x128xf32, #tpu.memory_space<vmem>>, vector<1x16x128xf32>
    %22 = vector.shape_cast %21 : vector<1x16x128xf32> to vector<16x128xf32>
    %23 = arith.addf %19, %22 : vector<16x128xf32>
    %cst_7 = arith.constant 5.000000e-01 : f32
    %24 = vector.broadcast %cst_7 : f32 to vector<16x128xf32>
    %25 = arith.cmpf ogt, %23, %24 : vector<16x128xf32>
    %26 = arith.extui %25 : vector<16x128xi1> to vector<16x128xi32>
    %27 = arith.sitofp %26 : vector<16x128xi32> to vector<16x128xf32>
    %28 = arith.truncf %27 : vector<16x128xf32> to vector<16x128xbf16>
    %c1_8 = arith.constant 1 : index
    %29 = arith.index_cast %3 : i32 to index
    %c0_9 = arith.constant 0 : index
    %30 = vector.load %arg2[%c1_8, %29, %c0_9] : memref<5x16x128xbf16, #tpu.memory_space<vmem>>, vector<1x16x128xbf16>
    %31 = vector.shape_cast %30 : vector<1x16x128xbf16> to vector<16x128xbf16>
    %32 = vector.shape_cast %28 : vector<16x128xbf16> to vector<1x16x128xbf16>
    tpu.vector_store %arg2[%c1_8, %29, %c0_9], %32 {strides = array<i32>} : memref<5x16x128xbf16, #tpu.memory_space<vmem>>, vector<1x16x128xbf16>,
    %cst_10 = arith.constant 2.500000e-01 : f32
    %33 = vector.broadcast %cst_10 : f32 to vector<16x128xf32>
    %34 = arith.mulf %23, %33 : vector<16x128xf32>
    %cst_11 = arith.constant 0.000000e+00 : f32
    %35 = vector.broadcast %cst_11 : f32 to vector<16x128xf32>
    %36 = arith.select %25, %35, %34 : vector<16x128xi1>, vector<16x128xf32>
    %c2 = arith.constant 2 : index
    %37 = arith.index_cast %3 : i32 to index
    %c0_12 = arith.constant 0 : index
    %38 = vector.load %arg1[%c2, %37, %c0_12] : memref<5x16x128xf32, #tpu.memory_space<vmem>>, vector<1x16x128xf32>
    %39 = vector.shape_cast %38 : vector<1x16x128xf32> to vector<16x128xf32>
    %40 = arith.addf %36, %39 : vector<16x128xf32>
    %cst_13 = arith.constant 5.000000e-01 : f32
    %41 = vector.broadcast %cst_13 : f32 to vector<16x128xf32>
    %42 = arith.cmpf ogt, %40, %41 : vector<16x128xf32>
    %43 = arith.extui %42 : vector<16x128xi1> to vector<16x128xi32>
    %44 = arith.sitofp %43 : vector<16x128xi32> to vector<16x128xf32>
    %45 = arith.truncf %44 : vector<16x128xf32> to vector<16x128xbf16>
    %c2_14 = arith.constant 2 : index
    %46 = arith.index_cast %3 : i32 to index
    %c0_15 = arith.constant 0 : index
    %47 = vector.load %arg2[%c2_14, %46, %c0_15] : memref<5x16x128xbf16, #tpu.memory_space<vmem>>, vector<1x16x128xbf16>
    %48 = vector.shape_cast %47 : vector<1x16x128xbf16> to vector<16x128xbf16>
    %49 = vector.shape_cast %45 : vector<16x128xbf16> to vector<1x16x128xbf16>
    tpu.vector_store %arg2[%c2_14, %46, %c0_15], %49 {strides = array<i32>} : memref<5x16x128xbf16, #tpu.memory_space<vmem>>, vector<1x16x128xbf16>,
    %cst_16 = arith.constant 2.500000e-01 : f32
    %50 = vector.broadcast %cst_16 : f32 to vector<16x128xf32>
    %51 = arith.mulf %40, %50 : vector<16x128xf32>
    %cst_17 = arith.constant 0.000000e+00 : f32
    %52 = vector.broadcast %cst_17 : f32 to vector<16x128xf32>
    %53 = arith.select %42, %52, %51 : vector<16x128xi1>, vector<16x128xf32>
    %c3 = arith.constant 3 : index
    %54 = arith.index_cast %3 : i32 to index
    %c0_18 = arith.constant 0 : index
    %55 = vector.load %arg1[%c3, %54, %c0_18] : memref<5x16x128xf32, #tpu.memory_space<vmem>>, vector<1x16x128xf32>
    %56 = vector.shape_cast %55 : vector<1x16x128xf32> to vector<16x128xf32>
    %57 = arith.addf %53, %56 : vector<16x128xf32>
    %cst_19 = arith.constant 5.000000e-01 : f32
    %58 = vector.broadcast %cst_19 : f32 to vector<16x128xf32>
    %59 = arith.cmpf ogt, %57, %58 : vector<16x128xf32>
    %60 = arith.extui %59 : vector<16x128xi1> to vector<16x128xi32>
    %61 = arith.sitofp %60 : vector<16x128xi32> to vector<16x128xf32>
    %62 = arith.truncf %61 : vector<16x128xf32> to vector<16x128xbf16>
    %c3_20 = arith.constant 3 : index
    %63 = arith.index_cast %3 : i32 to index
    %c0_21 = arith.constant 0 : index
    %64 = vector.load %arg2[%c3_20, %63, %c0_21] : memref<5x16x128xbf16, #tpu.memory_space<vmem>>, vector<1x16x128xbf16>
    %65 = vector.shape_cast %64 : vector<1x16x128xbf16> to vector<16x128xbf16>
    %66 = vector.shape_cast %62 : vector<16x128xbf16> to vector<1x16x128xbf16>
    tpu.vector_store %arg2[%c3_20, %63, %c0_21], %66 {strides = array<i32>} : memref<5x16x128xbf16, #tpu.memory_space<vmem>>, vector<1x16x128xbf16>,
    %cst_22 = arith.constant 2.500000e-01 : f32
    %67 = vector.broadcast %cst_22 : f32 to vector<16x128xf32>
    %68 = arith.mulf %57, %67 : vector<16x128xf32>
    %cst_23 = arith.constant 0.000000e+00 : f32
    %69 = vector.broadcast %cst_23 : f32 to vector<16x128xf32>
    %70 = arith.select %59, %69, %68 : vector<16x128xi1>, vector<16x128xf32>
    %c4 = arith.constant 4 : index
    %71 = arith.index_cast %3 : i32 to index
    %c0_24 = arith.constant 0 : index
    %72 = vector.load %arg1[%c4, %71, %c0_24] : memref<5x16x128xf32, #tpu.memory_space<vmem>>, vector<1x16x128xf32>
    %73 = vector.shape_cast %72 : vector<1x16x128xf32> to vector<16x128xf32>
    %74 = arith.addf %70, %73 : vector<16x128xf32>
    %cst_25 = arith.constant 5.000000e-01 : f32
    %75 = vector.broadcast %cst_25 : f32 to vector<16x128xf32>
    %76 = arith.cmpf ogt, %74, %75 : vector<16x128xf32>
    %77 = arith.extui %76 : vector<16x128xi1> to vector<16x128xi32>
    %78 = arith.sitofp %77 : vector<16x128xi32> to vector<16x128xf32>
    %79 = arith.truncf %78 : vector<16x128xf32> to vector<16x128xbf16>
    %c4_26 = arith.constant 4 : index
    %80 = arith.index_cast %3 : i32 to index
    %c0_27 = arith.constant 0 : index
    %81 = vector.load %arg2[%c4_26, %80, %c0_27] : memref<5x16x128xbf16, #tpu.memory_space<vmem>>, vector<1x16x128xbf16>
    %82 = vector.shape_cast %81 : vector<1x16x128xbf16> to vector<16x128xbf16>
    %83 = vector.shape_cast %79 : vector<16x128xbf16> to vector<1x16x128xbf16>
    tpu.vector_store %arg2[%c4_26, %80, %c0_27], %83 {strides = array<i32>} : memref<5x16x128xbf16, #tpu.memory_space<vmem>>, vector<1x16x128xbf16>,
    %c1_i32_28 = arith.constant 1 : i32
    return
  }
  func.func @transform_0(%arg0: i32) -> (i32, i32, i32) {
    %c0_i32 = arith.constant 0 : i32
    %c0_i32_0 = arith.constant 0 : i32
    %c0_i32_1 = arith.constant 0 : i32
    return %c0_i32, %arg0, %c0_i32_0 : i32, i32, i32
  }
  func.func @transform_1(%arg0: i32) -> (i32, i32, i32) {
    %c0_i32 = arith.constant 0 : i32
    %c0_i32_0 = arith.constant 0 : i32
    %c0_i32_1 = arith.constant 0 : i32
    return %c0_i32, %arg0, %c0_i32_0 : i32, i32, i32
  }
}

module attributes {stable_mosaic.version = 11 : i64} {
  func.func @_bn_stats_kernel(%arg0: i32, %arg1: i32, %arg2: memref<32x128xf32, #tpu.memory_space<vmem>>, %arg3: memref<1x8x128xf32, #tpu.memory_space<vmem>>, %arg4: memref<1x8x128xf32, #tpu.memory_space<vmem>>) attributes {dimension_semantics = [#tpu.dimension_semantics<parallel>, #tpu.dimension_semantics<arbitrary>], iteration_bounds = array<i64: 2, 1>, scalar_prefetch = 0 : i64, scratch_operands = 0 : i64, tpu.core_type = #tpu.core_type<tc>, window_params = [{transform_indices = @transform_0, window_bounds = array<i64: 32, 128>}, {transform_indices = @transform_1, window_bounds = array<i64: 1, 8, 128>}, {transform_indices = @transform_2, window_bounds = array<i64: 1, 8, 128>}]} {
    %c0_i32 = arith.constant 0 : i32
    %0 = arith.cmpi eq, %arg1, %c0_i32 : i32
    %1 = arith.extui %0 : i1 to i32
    %c0_i32_0 = arith.constant 0 : i32
    %2 = arith.cmpi ne, %1, %c0_i32_0 : i32
    scf.if %2 {
      %cst_15 = arith.constant 0.000000e+00 : f32
      %20 = vector.broadcast %cst_15 : f32 to vector<1x8x128xf32>
      %c0_16 = arith.constant 0 : index
      %c0_17 = arith.constant 0 : index
      %c0_18 = arith.constant 0 : index
      %21 = vector.load %arg3[%c0_16, %c0_17, %c0_18] : memref<1x8x128xf32, #tpu.memory_space<vmem>>, vector<1x8x128xf32>
      tpu.vector_store %arg3[%c0_16, %c0_17, %c0_18], %20 {strides = array<i32>} : memref<1x8x128xf32, #tpu.memory_space<vmem>>, vector<1x8x128xf32>,
      %cst_19 = arith.constant 0.000000e+00 : f32
      %22 = vector.broadcast %cst_19 : f32 to vector<1x8x128xf32>
      %c0_20 = arith.constant 0 : index
      %c0_21 = arith.constant 0 : index
      %c0_22 = arith.constant 0 : index
      %23 = vector.load %arg4[%c0_20, %c0_21, %c0_22] : memref<1x8x128xf32, #tpu.memory_space<vmem>>, vector<1x8x128xf32>
      tpu.vector_store %arg4[%c0_20, %c0_21, %c0_22], %22 {strides = array<i32>} : memref<1x8x128xf32, #tpu.memory_space<vmem>>, vector<1x8x128xf32>,
    } else {
    }
    %c0 = arith.constant 0 : index
    %c0_1 = arith.constant 0 : index
    %3 = vector.load %arg2[%c0, %c0_1] : memref<32x128xf32, #tpu.memory_space<vmem>>, vector<32x128xf32>
    %4 = vector.shape_cast %3 : vector<32x128xf32> to vector<4x8x128xf32>
    %c0_2 = arith.constant 0 : index
    %c0_3 = arith.constant 0 : index
    %c0_4 = arith.constant 0 : index
    %5 = vector.load %arg3[%c0_2, %c0_3, %c0_4] : memref<1x8x128xf32, #tpu.memory_space<vmem>>, vector<1x8x128xf32>
    %6 = vector.shape_cast %5 : vector<1x8x128xf32> to vector<8x128xf32>
    %cst = arith.constant dense<0.000000e+00> : vector<8x128xf32>
    %7 = vector.multi_reduction <add>, %4, %cst [0] : vector<4x8x128xf32> to vector<8x128xf32>
    %8 = arith.addf %6, %7 : vector<8x128xf32>
    %c0_5 = arith.constant 0 : index
    %c0_6 = arith.constant 0 : index
    %c0_7 = arith.constant 0 : index
    %9 = vector.load %arg3[%c0_5, %c0_6, %c0_7] : memref<1x8x128xf32, #tpu.memory_space<vmem>>, vector<1x8x128xf32>
    %10 = vector.shape_cast %9 : vector<1x8x128xf32> to vector<8x128xf32>
    %11 = vector.shape_cast %8 : vector<8x128xf32> to vector<1x8x128xf32>
    tpu.vector_store %arg3[%c0_5, %c0_6, %c0_7], %11 {strides = array<i32>} : memref<1x8x128xf32, #tpu.memory_space<vmem>>, vector<1x8x128xf32>,
    %c0_8 = arith.constant 0 : index
    %c0_9 = arith.constant 0 : index
    %c0_10 = arith.constant 0 : index
    %12 = vector.load %arg4[%c0_8, %c0_9, %c0_10] : memref<1x8x128xf32, #tpu.memory_space<vmem>>, vector<1x8x128xf32>
    %13 = vector.shape_cast %12 : vector<1x8x128xf32> to vector<8x128xf32>
    %14 = arith.mulf %4, %4 : vector<4x8x128xf32>
    %cst_11 = arith.constant dense<0.000000e+00> : vector<8x128xf32>
    %15 = vector.multi_reduction <add>, %14, %cst_11 [0] : vector<4x8x128xf32> to vector<8x128xf32>
    %16 = arith.addf %13, %15 : vector<8x128xf32>
    %c0_12 = arith.constant 0 : index
    %c0_13 = arith.constant 0 : index
    %c0_14 = arith.constant 0 : index
    %17 = vector.load %arg4[%c0_12, %c0_13, %c0_14] : memref<1x8x128xf32, #tpu.memory_space<vmem>>, vector<1x8x128xf32>
    %18 = vector.shape_cast %17 : vector<1x8x128xf32> to vector<8x128xf32>
    %19 = vector.shape_cast %16 : vector<8x128xf32> to vector<1x8x128xf32>
    tpu.vector_store %arg4[%c0_12, %c0_13, %c0_14], %19 {strides = array<i32>} : memref<1x8x128xf32, #tpu.memory_space<vmem>>, vector<1x8x128xf32>,
    return
  }
  func.func @transform_0(%arg0: i32, %arg1: i32) -> (i32, i32) {
    %c1_i32 = arith.constant 1 : i32
    %0 = arith.muli %arg0, %c1_i32 : i32
    %1 = arith.addi %0, %arg1 : i32
    %c0_i32 = arith.constant 0 : i32
    %c0_i32_0 = arith.constant 0 : i32
    return %1, %c0_i32 : i32, i32
  }
  func.func @transform_1(%arg0: i32, %arg1: i32) -> (i32, i32, i32) {
    %c0_i32 = arith.constant 0 : i32
    %c0_i32_0 = arith.constant 0 : i32
    %c0_i32_1 = arith.constant 0 : i32
    return %arg0, %c0_i32, %c0_i32_0 : i32, i32, i32
  }
  func.func @transform_2(%arg0: i32, %arg1: i32) -> (i32, i32, i32) {
    %c0_i32 = arith.constant 0 : i32
    %c0_i32_0 = arith.constant 0 : i32
    %c0_i32_1 = arith.constant 0 : i32
    return %arg0, %c0_i32, %c0_i32_0 : i32, i32, i32
  }
}

module attributes {stable_mosaic.version = 11 : i64} {
  func.func @_bn_mem_update_kernel(%arg0: i32, %arg1: memref<5x16x128xf32, #tpu.memory_space<vmem>>, %arg2: memref<1x128xf32, #tpu.memory_space<vmem>>, %arg3: memref<1x128xf32, #tpu.memory_space<vmem>>, %arg4: memref<5x16x128xbf16, #tpu.memory_space<vmem>>) attributes {dimension_semantics = [#tpu.dimension_semantics<parallel>], iteration_bounds = array<i64: 1>, scalar_prefetch = 0 : i64, scratch_operands = 0 : i64, tpu.core_type = #tpu.core_type<tc>, window_params = [{transform_indices = @transform_0, window_bounds = array<i64: 5, 16, 128>}, {pipeline_mode = #tpu.pipeline_mode<synchronous>, transform_indices = @transform_1, window_bounds = array<i64: 1, 128>}, {pipeline_mode = #tpu.pipeline_mode<synchronous>, transform_indices = @transform_2, window_bounds = array<i64: 1, 128>}, {transform_indices = @transform_3, window_bounds = array<i64: 5, 16, 128>}]} {
    %c0 = arith.constant 0 : index
    %c0_0 = arith.constant 0 : index
    %0 = vector.load %arg2[%c0, %c0_0] : memref<1x128xf32, #tpu.memory_space<vmem>>, vector<1x128xf32>
    %c0_1 = arith.constant 0 : index
    %c0_2 = arith.constant 0 : index
    %1 = vector.load %arg3[%c0_1, %c0_2] : memref<1x128xf32, #tpu.memory_space<vmem>>, vector<1x128xf32>
    %c0_i32 = arith.constant 0 : i32
    %c1_i32 = arith.constant 1 : i32
    %2 = arith.muli %c0_i32, %c1_i32 : i32
    %c0_i32_3 = arith.constant 0 : i32
    %3 = arith.addi %c0_i32_3, %2 : i32
    %c16_i32 = arith.constant 16 : i32
    %4 = arith.muli %3, %c16_i32 : i32
    %5 = tpu.assume_multiple %4, 8 : i32
    %c0_4 = arith.constant 0 : index
    %6 = arith.index_cast %5 : i32 to index
    %c0_5 = arith.constant 0 : index
    %7 = vector.load %arg1[%c0_4, %6, %c0_5] : memref<5x16x128xf32, #tpu.memory_space<vmem>>, vector<1x16x128xf32>
    %8 = vector.shape_cast %7 : vector<1x16x128xf32> to vector<16x128xf32>
    %9 = vector.broadcast %0 : vector<1x128xf32> to vector<16x128xf32>
    %10 = arith.mulf %8, %9 : vector<16x128xf32>
    %11 = vector.broadcast %1 : vector<1x128xf32> to vector<16x128xf32>
    %12 = arith.addf %10, %11 : vector<16x128xf32>
    %cst = arith.constant 5.000000e-01 : f32
    %13 = vector.broadcast %cst : f32 to vector<16x128xf32>
    %14 = arith.cmpf ogt, %12, %13 : vector<16x128xf32>
    %15 = arith.extui %14 : vector<16x128xi1> to vector<16x128xi32>
    %16 = arith.sitofp %15 : vector<16x128xi32> to vector<16x128xf32>
    %17 = arith.truncf %16 : vector<16x128xf32> to vector<16x128xbf16>
    %c0_6 = arith.constant 0 : index
    %18 = arith.index_cast %5 : i32 to index
    %c0_7 = arith.constant 0 : index
    %19 = vector.load %arg4[%c0_6, %18, %c0_7] : memref<5x16x128xbf16, #tpu.memory_space<vmem>>, vector<1x16x128xbf16>
    %20 = vector.shape_cast %19 : vector<1x16x128xbf16> to vector<16x128xbf16>
    %21 = vector.shape_cast %17 : vector<16x128xbf16> to vector<1x16x128xbf16>
    tpu.vector_store %arg4[%c0_6, %18, %c0_7], %21 {strides = array<i32>} : memref<5x16x128xbf16, #tpu.memory_space<vmem>>, vector<1x16x128xbf16>,
    %cst_8 = arith.constant 2.500000e-01 : f32
    %22 = vector.broadcast %cst_8 : f32 to vector<16x128xf32>
    %23 = arith.mulf %12, %22 : vector<16x128xf32>
    %cst_9 = arith.constant 0.000000e+00 : f32
    %24 = vector.broadcast %cst_9 : f32 to vector<16x128xf32>
    %25 = arith.select %14, %24, %23 : vector<16x128xi1>, vector<16x128xf32>
    %c1 = arith.constant 1 : index
    %26 = arith.index_cast %5 : i32 to index
    %c0_10 = arith.constant 0 : index
    %27 = vector.load %arg1[%c1, %26, %c0_10] : memref<5x16x128xf32, #tpu.memory_space<vmem>>, vector<1x16x128xf32>
    %28 = vector.shape_cast %27 : vector<1x16x128xf32> to vector<16x128xf32>
    %29 = vector.broadcast %0 : vector<1x128xf32> to vector<16x128xf32>
    %30 = arith.mulf %28, %29 : vector<16x128xf32>
    %31 = vector.broadcast %1 : vector<1x128xf32> to vector<16x128xf32>
    %32 = arith.addf %30, %31 : vector<16x128xf32>
    %33 = arith.addf %25, %32 : vector<16x128xf32>
    %cst_11 = arith.constant 5.000000e-01 : f32
    %34 = vector.broadcast %cst_11 : f32 to vector<16x128xf32>
    %35 = arith.cmpf ogt, %33, %34 : vector<16x128xf32>
    %36 = arith.extui %35 : vector<16x128xi1> to vector<16x128xi32>
    %37 = arith.sitofp %36 : vector<16x128xi32> to vector<16x128xf32>
    %38 = arith.truncf %37 : vector<16x128xf32> to vector<16x128xbf16>
    %c1_12 = arith.constant 1 : index
    %39 = arith.index_cast %5 : i32 to index
    %c0_13 = arith.constant 0 : index
    %40 = vector.load %arg4[%c1_12, %39, %c0_13] : memref<5x16x128xbf16, #tpu.memory_space<vmem>>, vector<1x16x128xbf16>
    %41 = vector.shape_cast %40 : vector<1x16x128xbf16> to vector<16x128xbf16>
    %42 = vector.shape_cast %38 : vector<16x128xbf16> to vector<1x16x128xbf16>
    tpu.vector_store %arg4[%c1_12, %39, %c0_13], %42 {strides = array<i32>} : memref<5x16x128xbf16, #tpu.memory_space<vmem>>, vector<1x16x128xbf16>,
    %cst_14 = arith.constant 2.500000e-01 : f32
    %43 = vector.broadcast %cst_14 : f32 to vector<16x128xf32>
    %44 = arith.mulf %33, %43 : vector<16x128xf32>
    %cst_15 = arith.constant 0.000000e+00 : f32
    %45 = vector.broadcast %cst_15 : f32 to vector<16x128xf32>
    %46 = arith.select %35, %45, %44 : vector<16x128xi1>, vector<16x128xf32>
    %c2 = arith.constant 2 : index
    %47 = arith.index_cast %5 : i32 to index
    %c0_16 = arith.constant 0 : index
    %48 = vector.load %arg1[%c2, %47, %c0_16] : memref<5x16x128xf32, #tpu.memory_space<vmem>>, vector<1x16x128xf32>
    %49 = vector.shape_cast %48 : vector<1x16x128xf32> to vector<16x128xf32>
    %50 = vector.broadcast %0 : vector<1x128xf32> to vector<16x128xf32>
    %51 = arith.mulf %49, %50 : vector<16x128xf32>
    %52 = vector.broadcast %1 : vector<1x128xf32> to vector<16x128xf32>
    %53 = arith.addf %51, %52 : vector<16x128xf32>
    %54 = arith.addf %46, %53 : vector<16x128xf32>
    %cst_17 = arith.constant 5.000000e-01 : f32
    %55 = vector.broadcast %cst_17 : f32 to vector<16x128xf32>
    %56 = arith.cmpf ogt, %54, %55 : vector<16x128xf32>
    %57 = arith.extui %56 : vector<16x128xi1> to vector<16x128xi32>
    %58 = arith.sitofp %57 : vector<16x128xi32> to vector<16x128xf32>
    %59 = arith.truncf %58 : vector<16x128xf32> to vector<16x128xbf16>
    %c2_18 = arith.constant 2 : index
    %60 = arith.index_cast %5 : i32 to index
    %c0_19 = arith.constant 0 : index
    %61 = vector.load %arg4[%c2_18, %60, %c0_19] : memref<5x16x128xbf16, #tpu.memory_space<vmem>>, vector<1x16x128xbf16>
    %62 = vector.shape_cast %61 : vector<1x16x128xbf16> to vector<16x128xbf16>
    %63 = vector.shape_cast %59 : vector<16x128xbf16> to vector<1x16x128xbf16>
    tpu.vector_store %arg4[%c2_18, %60, %c0_19], %63 {strides = array<i32>} : memref<5x16x128xbf16, #tpu.memory_space<vmem>>, vector<1x16x128xbf16>,
    %cst_20 = arith.constant 2.500000e-01 : f32
    %64 = vector.broadcast %cst_20 : f32 to vector<16x128xf32>
    %65 = arith.mulf %54, %64 : vector<16x128xf32>
    %cst_21 = arith.constant 0.000000e+00 : f32
    %66 = vector.broadcast %cst_21 : f32 to vector<16x128xf32>
    %67 = arith.select %56, %66, %65 : vector<16x128xi1>, vector<16x128xf32>
    %c3 = arith.constant 3 : index
    %68 = arith.index_cast %5 : i32 to index
    %c0_22 = arith.constant 0 : index
    %69 = vector.load %arg1[%c3, %68, %c0_22] : memref<5x16x128xf32, #tpu.memory_space<vmem>>, vector<1x16x128xf32>
    %70 = vector.shape_cast %69 : vector<1x16x128xf32> to vector<16x128xf32>
    %71 = vector.broadcast %0 : vector<1x128xf32> to vector<16x128xf32>
    %72 = arith.mulf %70, %71 : vector<16x128xf32>
    %73 = vector.broadcast %1 : vector<1x128xf32> to vector<16x128xf32>
    %74 = arith.addf %72, %73 : vector<16x128xf32>
    %75 = arith.addf %67, %74 : vector<16x128xf32>
    %cst_23 = arith.constant 5.000000e-01 : f32
    %76 = vector.broadcast %cst_23 : f32 to vector<16x128xf32>
    %77 = arith.cmpf ogt, %75, %76 : vector<16x128xf32>
    %78 = arith.extui %77 : vector<16x128xi1> to vector<16x128xi32>
    %79 = arith.sitofp %78 : vector<16x128xi32> to vector<16x128xf32>
    %80 = arith.truncf %79 : vector<16x128xf32> to vector<16x128xbf16>
    %c3_24 = arith.constant 3 : index
    %81 = arith.index_cast %5 : i32 to index
    %c0_25 = arith.constant 0 : index
    %82 = vector.load %arg4[%c3_24, %81, %c0_25] : memref<5x16x128xbf16, #tpu.memory_space<vmem>>, vector<1x16x128xbf16>
    %83 = vector.shape_cast %82 : vector<1x16x128xbf16> to vector<16x128xbf16>
    %84 = vector.shape_cast %80 : vector<16x128xbf16> to vector<1x16x128xbf16>
    tpu.vector_store %arg4[%c3_24, %81, %c0_25], %84 {strides = array<i32>} : memref<5x16x128xbf16, #tpu.memory_space<vmem>>, vector<1x16x128xbf16>,
    %cst_26 = arith.constant 2.500000e-01 : f32
    %85 = vector.broadcast %cst_26 : f32 to vector<16x128xf32>
    %86 = arith.mulf %75, %85 : vector<16x128xf32>
    %cst_27 = arith.constant 0.000000e+00 : f32
    %87 = vector.broadcast %cst_27 : f32 to vector<16x128xf32>
    %88 = arith.select %77, %87, %86 : vector<16x128xi1>, vector<16x128xf32>
    %c4 = arith.constant 4 : index
    %89 = arith.index_cast %5 : i32 to index
    %c0_28 = arith.constant 0 : index
    %90 = vector.load %arg1[%c4, %89, %c0_28] : memref<5x16x128xf32, #tpu.memory_space<vmem>>, vector<1x16x128xf32>
    %91 = vector.shape_cast %90 : vector<1x16x128xf32> to vector<16x128xf32>
    %92 = vector.broadcast %0 : vector<1x128xf32> to vector<16x128xf32>
    %93 = arith.mulf %91, %92 : vector<16x128xf32>
    %94 = vector.broadcast %1 : vector<1x128xf32> to vector<16x128xf32>
    %95 = arith.addf %93, %94 : vector<16x128xf32>
    %96 = arith.addf %88, %95 : vector<16x128xf32>
    %cst_29 = arith.constant 5.000000e-01 : f32
    %97 = vector.broadcast %cst_29 : f32 to vector<16x128xf32>
    %98 = arith.cmpf ogt, %96, %97 : vector<16x128xf32>
    %99 = arith.extui %98 : vector<16x128xi1> to vector<16x128xi32>
    %100 = arith.sitofp %99 : vector<16x128xi32> to vector<16x128xf32>
    %101 = arith.truncf %100 : vector<16x128xf32> to vector<16x128xbf16>
    %c4_30 = arith.constant 4 : index
    %102 = arith.index_cast %5 : i32 to index
    %c0_31 = arith.constant 0 : index
    %103 = vector.load %arg4[%c4_30, %102, %c0_31] : memref<5x16x128xbf16, #tpu.memory_space<vmem>>, vector<1x16x128xbf16>
    %104 = vector.shape_cast %103 : vector<1x16x128xbf16> to vector<16x128xbf16>
    %105 = vector.shape_cast %101 : vector<16x128xbf16> to vector<1x16x128xbf16>
    tpu.vector_store %arg4[%c4_30, %102, %c0_31], %105 {strides = array<i32>} : memref<5x16x128xbf16, #tpu.memory_space<vmem>>, vector<1x16x128xbf16>,
    %c1_i32_32 = arith.constant 1 : i32
    return
  }
  func.func @transform_0(%arg0: i32) -> (i32, i32, i32) {
    %c0_i32 = arith.constant 0 : i32
    %c0_i32_0 = arith.constant 0 : i32
    %c0_i32_1 = arith.constant 0 : i32
    return %c0_i32, %arg0, %c0_i32_0 : i32, i32, i32
  }
  func.func @transform_1(%arg0: i32) -> (i32, i32) {
    %c0_i32 = arith.constant 0 : i32
    %c0_i32_0 = arith.constant 0 : i32
    %c0_i32_1 = arith.constant 0 : i32
    return %c0_i32, %c0_i32_0 : i32, i32
  }
  func.func @transform_2(%arg0: i32) -> (i32, i32) {
    %c0_i32 = arith.constant 0 : i32
    %c0_i32_0 = arith.constant 0 : i32
    %c0_i32_1 = arith.constant 0 : i32
    return %c0_i32, %c0_i32_0 : i32, i32
  }
  func.func @transform_3(%arg0: i32) -> (i32, i32, i32) {
    %c0_i32 = arith.constant 0 : i32
    %c0_i32_0 = arith.constant 0 : i32
    %c0_i32_1 = arith.constant 0 : i32
    return %c0_i32, %arg0, %c0_i32_0 : i32, i32, i32
  }
}

module attributes {stable_mosaic.version = 11 : i64} {
  func.func @_dual_bn_add_kernel(%arg0: i32, %arg1: memref<32x128xf32, #tpu.memory_space<vmem>>, %arg2: memref<32x128xf32, #tpu.memory_space<vmem>>, %arg3: memref<1x128xf32, #tpu.memory_space<vmem>>, %arg4: memref<1x128xf32, #tpu.memory_space<vmem>>, %arg5: memref<1x128xf32, #tpu.memory_space<vmem>>, %arg6: memref<1x128xf32, #tpu.memory_space<vmem>>, %arg7: memref<32x128xf32, #tpu.memory_space<vmem>>) attributes {dimension_semantics = [#tpu.dimension_semantics<parallel>], iteration_bounds = array<i64: 2>, scalar_prefetch = 0 : i64, scratch_operands = 0 : i64, tpu.core_type = #tpu.core_type<tc>, window_params = [{transform_indices = @transform_0, window_bounds = array<i64: 32, 128>}, {transform_indices = @transform_1, window_bounds = array<i64: 32, 128>}, {pipeline_mode = #tpu.pipeline_mode<synchronous>, transform_indices = @transform_2, window_bounds = array<i64: 1, 128>}, {pipeline_mode = #tpu.pipeline_mode<synchronous>, transform_indices = @transform_3, window_bounds = array<i64: 1, 128>}, {pipeline_mode = #tpu.pipeline_mode<synchronous>, transform_indices = @transform_4, window_bounds = array<i64: 1, 128>}, {pipeline_mode = #tpu.pipeline_mode<synchronous>, transform_indices = @transform_5, window_bounds = array<i64: 1, 128>}, {transform_indices = @transform_6, window_bounds = array<i64: 32, 128>}]} {
    %c0 = arith.constant 0 : index
    %c0_0 = arith.constant 0 : index
    %0 = vector.load %arg1[%c0, %c0_0] : memref<32x128xf32, #tpu.memory_space<vmem>>, vector<32x128xf32>
    %c0_1 = arith.constant 0 : index
    %c0_2 = arith.constant 0 : index
    %1 = vector.load %arg3[%c0_1, %c0_2] : memref<1x128xf32, #tpu.memory_space<vmem>>, vector<1x128xf32>
    %2 = vector.broadcast %1 : vector<1x128xf32> to vector<32x128xf32>
    %3 = arith.mulf %0, %2 : vector<32x128xf32>
    %c0_3 = arith.constant 0 : index
    %c0_4 = arith.constant 0 : index
    %4 = vector.load %arg4[%c0_3, %c0_4] : memref<1x128xf32, #tpu.memory_space<vmem>>, vector<1x128xf32>
    %5 = vector.broadcast %4 : vector<1x128xf32> to vector<32x128xf32>
    %6 = arith.addf %3, %5 : vector<32x128xf32>
    %c0_5 = arith.constant 0 : index
    %c0_6 = arith.constant 0 : index
    %7 = vector.load %arg2[%c0_5, %c0_6] : memref<32x128xf32, #tpu.memory_space<vmem>>, vector<32x128xf32>
    %c0_7 = arith.constant 0 : index
    %c0_8 = arith.constant 0 : index
    %8 = vector.load %arg5[%c0_7, %c0_8] : memref<1x128xf32, #tpu.memory_space<vmem>>, vector<1x128xf32>
    %9 = vector.broadcast %8 : vector<1x128xf32> to vector<32x128xf32>
    %10 = arith.mulf %7, %9 : vector<32x128xf32>
    %11 = arith.addf %6, %10 : vector<32x128xf32>
    %c0_9 = arith.constant 0 : index
    %c0_10 = arith.constant 0 : index
    %12 = vector.load %arg6[%c0_9, %c0_10] : memref<1x128xf32, #tpu.memory_space<vmem>>, vector<1x128xf32>
    %13 = vector.broadcast %12 : vector<1x128xf32> to vector<32x128xf32>
    %14 = arith.addf %11, %13 : vector<32x128xf32>
    %c0_11 = arith.constant 0 : index
    %c0_12 = arith.constant 0 : index
    %15 = vector.load %arg7[%c0_11, %c0_12] : memref<32x128xf32, #tpu.memory_space<vmem>>, vector<32x128xf32>
    tpu.vector_store %arg7[%c0_11, %c0_12], %14 {strides = array<i32>} : memref<32x128xf32, #tpu.memory_space<vmem>>, vector<32x128xf32>,
    return
  }
  func.func @transform_0(%arg0: i32) -> (i32, i32) {
    %c0_i32 = arith.constant 0 : i32
    %c0_i32_0 = arith.constant 0 : i32
    return %arg0, %c0_i32 : i32, i32
  }
  func.func @transform_1(%arg0: i32) -> (i32, i32) {
    %c0_i32 = arith.constant 0 : i32
    %c0_i32_0 = arith.constant 0 : i32
    return %arg0, %c0_i32 : i32, i32
  }
  func.func @transform_2(%arg0: i32) -> (i32, i32) {
    %c0_i32 = arith.constant 0 : i32
    %c0_i32_0 = arith.constant 0 : i32
    %c0_i32_1 = arith.constant 0 : i32
    return %c0_i32, %c0_i32_0 : i32, i32
  }
  func.func @transform_3(%arg0: i32) -> (i32, i32) {
    %c0_i32 = arith.constant 0 : i32
    %c0_i32_0 = arith.constant 0 : i32
    %c0_i32_1 = arith.constant 0 : i32
    return %c0_i32, %c0_i32_0 : i32, i32
  }
  func.func @transform_4(%arg0: i32) -> (i32, i32) {
    %c0_i32 = arith.constant 0 : i32
    %c0_i32_0 = arith.constant 0 : i32
    %c0_i32_1 = arith.constant 0 : i32
    return %c0_i32, %c0_i32_0 : i32, i32
  }
  func.func @transform_5(%arg0: i32) -> (i32, i32) {
    %c0_i32 = arith.constant 0 : i32
    %c0_i32_0 = arith.constant 0 : i32
    %c0_i32_1 = arith.constant 0 : i32
    return %c0_i32, %c0_i32_0 : i32, i32
  }
  func.func @transform_6(%arg0: i32) -> (i32, i32) {
    %c0_i32 = arith.constant 0 : i32
    %c0_i32_0 = arith.constant 0 : i32
    return %arg0, %c0_i32 : i32, i32
  }
}

</mosaic_0001>

<llo_original>
// kernel: basic_block_2.7
$region0: #{basic_block_2.7}
  #allocation0 [shape = 'u32[]', space=smem, size = 0x4, offset = 0x4, fixed_abs, tag = 'smem constant byte address 0x4 - core index']
  #allocation1 [shape = 'u32[144,128]{1,0:T(1,128)}', space=vmem, size = 0x12000, scoped, tag = 'internal scratch']
  %s0 = inlined_call_operand.vmem [shape: f32[5,16,128], index: 0, kind: input, shape index: {}]
  %s1 = inlined_call_operand.vmem [shape: bf16[5,16,128], index: 1, kind: output, shape index: {}]
  %s2 = sld [smem:[#allocation0]]
  $region14: #{basic_block_2.7} parent=0
    _
  %s4 = ssub.s32 1, %s2
  %s5 = scalar_select 0, %s4, %s2
  // Predicated region
  $region2: #{basic_block_2.7} parent=0 // pred_check
    _
  $region3: #{basic_block_2.7} parent=0 // pred_check_branch
    %7 = sbr.rel (0) target = $region5
  $region4: #{basic_block_2.7} parent=0 // pred_region
    _
  $region5: #{basic_block_2.7} parent=0 // pred_fallthru
    _
  %v8 = vld [vmem:[%s0] sm:$0xff]
  %v9 = vld [vmem:[%s0 + $0x8] sm:$0xff]
  %vm10 = vcmp.gt.f32.partialorder %v8, 0.5
  %vm11 = vcmp.gt.f32.partialorder %v9, 0.5
  %v12 = vsel %vm10, 1, 0
  %v13 = vsel %vm11, 1, 0
  %v14 = vcvt.s32.f32 %v12
  %v15 = vcvt.s32.f32 %v13
  %v16 = vpack.c.bf16 %v15, %v14
  %v18 = vunpack.c.l.b16 %v16
  %v19 = vunpack.c.h.b16 %v16
  %v20 = vpack.c.b16 %v18, %v18
  %v21 = vpack.c.b16 %v19, %v19
  %24 = vst [vmem:[%s1] sm:$0xf] %v20
  %25 = vst [vmem:[%s1 + $0x4] sm:$0xf] %v21
  %v26 = vmul.f32 %v8, 0.25
  %v27 = vmul.f32 %v9, 0.25
  %v28 = vsel %vm10, 0.0, %v26
  %v29 = vsel %vm11, 0.0, %v27
  %s30 = sadd.s32 0, 16
  %s31 = scalar_lea.vmem %s0, %s30
  %v32 = vld [vmem:[%s31] sm:$0xff]
  %v33 = vld [vmem:[%s31 + $0x8] sm:$0xff]
  %v34 = vadd.f32 %v28, %v32
  %v35 = vadd.f32 %v29, %v33
  %vm36 = vcmp.gt.f32.partialorder %v34, 0.5
  %vm37 = vcmp.gt.f32.partialorder %v35, 0.5
  %v38 = vsel %vm36, 1, 0
  %v39 = vsel %vm37, 1, 0
  %v40 = vcvt.s32.f32 %v38
  %v41 = vcvt.s32.f32 %v39
  %v42 = vpack.c.bf16 %v41, %v40
  %v44 = vunpack.c.l.b16 %v42
  %v45 = vunpack.c.h.b16 %v42
  %v46 = vpack.c.b16 %v44, %v44
  %v47 = vpack.c.b16 %v45, %v45
  %s50 = sadd.s32 0, 2
  %s51 = smul.addr %s50, 4
  %s52 = scalar_lea.vmem %s1, %s51
  %53 = vst [vmem:[%s52] sm:$0xf] %v46
  %54 = vst [vmem:[%s52 + $0x4] sm:$0xf] %v47
  %v55 = vmul.f32 %v34, 0.25
  %v56 = vmul.f32 %v35, 0.25
  %v57 = vsel %vm36, 0.0, %v55
  %v58 = vsel %vm37, 0.0, %v56
  %s59 = sadd.s32 0, 32
  %s60 = scalar_lea.vmem %s0, %s59
  %v61 = vld [vmem:[%s60] sm:$0xff]
  %v62 = vld [vmem:[%s60 + $0x8] sm:$0xff]
  %v63 = vadd.f32 %v57, %v61
  %v64 = vadd.f32 %v58, %v62
  %vm65 = vcmp.gt.f32.partialorder %v63, 0.5
  %vm66 = vcmp.gt.f32.partialorder %v64, 0.5
  %v67 = vsel %vm65, 1, 0
  %v68 = vsel %vm66, 1, 0
  %v69 = vcvt.s32.f32 %v67
  %v70 = vcvt.s32.f32 %v68
  %v71 = vpack.c.bf16 %v70, %v69
  %v73 = vunpack.c.l.b16 %v71
  %v74 = vunpack.c.h.b16 %v71
  %v75 = vpack.c.b16 %v73, %v73
  %v76 = vpack.c.b16 %v74, %v74
  %s79 = sadd.s32 0, 4
  %s80 = smul.addr %s79, 4
  %s81 = scalar_lea.vmem %s1, %s80
  %82 = vst [vmem:[%s81] sm:$0xf] %v75
  %83 = vst [vmem:[%s81 + $0x4] sm:$0xf] %v76
  %v84 = vmul.f32 %v63, 0.25
  %v85 = vmul.f32 %v64, 0.25
  %v86 = vsel %vm65, 0.0, %v84
  %v87 = vsel %vm66, 0.0, %v85
  %s88 = sadd.s32 0, 48
  %s89 = scalar_lea.vmem %s0, %s88
  %v90 = vld [vmem:[%s89] sm:$0xff]
  %v91 = vld [vmem:[%s89 + $0x8] sm:$0xff]
  %v92 = vadd.f32 %v86, %v90
  %v93 = vadd.f32 %v87, %v91
  %vm94 = vcmp.gt.f32.partialorder %v92, 0.5
  %vm95 = vcmp.gt.f32.partialorder %v93, 0.5
  %v96 = vsel %vm94, 1, 0
  %v97 = vsel %vm95, 1, 0
  %v98 = vcvt.s32.f32 %v96
  %v99 = vcvt.s32.f32 %v97
  %v100 = vpack.c.bf16 %v99, %v98
  %v102 = vunpack.c.l.b16 %v100
  %v103 = vunpack.c.h.b16 %v100
  %v104 = vpack.c.b16 %v102, %v102
  %v105 = vpack.c.b16 %v103, %v103
  %s108 = sadd.s32 0, 6
  %s109 = smul.addr %s108, 4
  %s110 = scalar_lea.vmem %s1, %s109
  %111 = vst [vmem:[%s110] sm:$0xf] %v104
  %112 = vst [vmem:[%s110 + $0x4] sm:$0xf] %v105
  %v113 = vmul.f32 %v92, 0.25
  %v114 = vmul.f32 %v93, 0.25
  %v115 = vsel %vm94, 0.0, %v113
  %v116 = vsel %vm95, 0.0, %v114
  %s117 = sadd.s32 0, 64
  %s118 = scalar_lea.vmem %s0, %s117
  %v119 = vld [vmem:[%s118] sm:$0xff]
  %v120 = vld [vmem:[%s118 + $0x8] sm:$0xff]
  %v121 = vadd.f32 %v115, %v119
  %v122 = vadd.f32 %v116, %v120
  %vm123 = vcmp.gt.f32.partialorder %v121, 0.5
  %vm124 = vcmp.gt.f32.partialorder %v122, 0.5
  %v125 = vsel %vm123, 1, 0
  %v126 = vsel %vm124, 1, 0
  %v127 = vcvt.s32.f32 %v125
  %v128 = vcvt.s32.f32 %v126
  %v129 = vpack.c.bf16 %v128, %v127
  %v131 = vunpack.c.l.b16 %v129
  %v132 = vunpack.c.h.b16 %v129
  %v133 = vpack.c.b16 %v131, %v131
  %v134 = vpack.c.b16 %v132, %v132
  %s137 = sadd.s32 0, 8
  %s138 = smul.addr %s137, 4
  %s139 = scalar_lea.vmem %s1, %s138
  %140 = vst [vmem:[%s139] sm:$0xf] %v133
  %141 = vst [vmem:[%s139 + $0x4] sm:$0xf] %v134
  // Predicated region
  $region6: #{basic_block_2.7} parent=0 // pred_check
    _
  $region7: #{basic_block_2.7} parent=0 // pred_check_branch
    %143 = sbr.rel (0) target = $region9
  $region8: #{basic_block_2.7} parent=0 // pred_region
    _
  $region9: #{basic_block_2.7} parent=0 // pred_fallthru
    _
  // Predicated region
  $region10: #{basic_block_2.7} parent=0 // pred_check
    _
  $region11: #{basic_block_2.7} parent=0 // pred_check_branch
    %145 = sbr.rel (0) target = $region13
  $region12: #{basic_block_2.7} parent=0 // pred_region
    _
  $region13: #{basic_block_2.7} parent=0 // pred_fallthru
    _

// kernel: basic_block_2.8
$region0: #{basic_block_2.8}
  #allocation0 [shape = 'u32[]', space=smem, size = 0x4, offset = 0x4, fixed_abs, tag = 'smem constant byte address 0x4 - core index']
  #allocation1 [shape = 'u32[144,128]{1,0:T(1,128)}', space=vmem, size = 0x12000, scoped, tag = 'internal scratch']
  %s0 = inlined_call_operand.vmem [shape: f32[64,128], index: 0, kind: input, shape index: {}]
  %s1 = inlined_call_operand.vmem [shape: f32[2,8,128], index: 1, kind: output, shape index: {0}]
  %s2 = inlined_call_operand.vmem [shape: f32[2,8,128], index: 2, kind: output, shape index: {1}]
  %3 = xla_tuple %s1, %s2
  %s4 = sld [smem:[#allocation0]]
  $region49: #{basic_block_2.8} parent=0
    _
  %s6 = ssub.s32 1, %s4
  %s7 = scalar_select 0, %s6, %s4
  loop: start=0, step=1, limit=4
  $region2: #{basic_block_2.8} parent=0 // loop_pre_header
    _
  $region3: #{basic_block_2.8} parent=0 // loop_header
    %s9 = sphi 0, %s13
    %p10 = scmp.ge.s32.totalorder %s9, 4
    %s16 = sphi 0, %s28
    %s17 = sphi 0, %s24
    %s18 = sphi 0, %s16
    %s19 = sphi 0, %s17
    %s20 = sphi 0, %s18
    %s21 = sphi 0, %s19
    %s33 = sphi 0, %s35
    %s36 = sphi 0, %s33
    %s37 = sphi 0, %s36
    %s53 = sphi 0, %s37
    %s59 = sphi 0, %s61
    %s62 = sphi 0, %s59
    %s63 = sphi 0, %s62
    %s79 = sphi 0, %s63
    %s85 = sphi 0, %s87
    %s88 = sphi 0, %s85
    %s89 = sphi 0, %s88
    %s105 = sphi 0, %s89
  $region4: #{basic_block_2.8} parent=0 // loop_header_branch
    %12 = sbr.rel (%p10) target = $region8
  $region5: #{basic_block_2.8} parent=0 // loop_body
    %s14 = ssub.s32 %s9, 1
    %s15 = ssub.s32 %s9, 2
    %s22 = sadd.s32 1, %s17
    %p23 = scmp.ge.s32.totalorder %s22, 1
    %s24 = scalar_select %p23, 0, %s22
    %s25 = sadd.s32 1, %s16
    %s26 = scalar_select %p23, %s25, %s16
    %p27 = scmp.ge.s32.totalorder %s26, 2
    %s28 = scalar_select %p27, 0, %s26
    %s29 = sadd.s32 %s16, %s17
    %s30 = sadd.s32 %s28, %s24
    %s31 = ssub.s32 %s29, %s30
    %p32 = scmp.eq.s32.totalorder %s31, 0
    %s34 = sadd.s32 %s33, 1
    %s35 = scalar_select %p32, %s33, %s34
    %p38 = pneg %p32
    %p39 = scmp.eq.s32.totalorder %s9, 1
    %p40 = por %p38, %p39
    %p41 = scmp.ne.s32.totalorder %s33, %s36
    %p42 = scmp.eq.s32.totalorder %s9, 0
    %p43 = por %p41, %p42
    %p44 = scmp.ne.s32.totalorder %s33, %s36
    %p45 = scmp.eq.s32.totalorder %s14, 1
    %p46 = por %p44, %p45
    %p47 = scmp.ne.s32.totalorder %s36, %s37
    %p48 = scmp.eq.s32.totalorder %s14, 0
    %p49 = por %p47, %p48
    %p50 = scmp.ne.s32.totalorder %s36, %s37
    %p51 = scmp.eq.s32.totalorder %s15, 1
    %p52 = por %p50, %p51
    %p54 = scmp.ne.s32.totalorder %s37, %s53
    %p55 = scmp.eq.s32.totalorder %s15, 0
    %p56 = por %p54, %p55
    %s57 = ssub.s32 %s16, %s28
    %p58 = scmp.eq.s32.totalorder %s57, 0
    %s60 = sadd.s32 %s59, 1
    %s61 = scalar_select %p58, %s59, %s60
    %p64 = pneg %p58
    %p65 = scmp.eq.s32.totalorder %s9, 1
    %p66 = por %p64, %p65
    %p67 = scmp.ne.s32.totalorder %s59, %s62
    %p68 = scmp.eq.s32.totalorder %s9, 0
    %p69 = por %p67, %p68
    %p70 = scmp.ne.s32.totalorder %s59, %s62
    %p71 = scmp.eq.s32.totalorder %s14, 1
    %p72 = por %p70, %p71
    %p73 = scmp.ne.s32.totalorder %s62, %s63
    %p74 = scmp.eq.s32.totalorder %s14, 0
    %p75 = por %p73, %p74
    %p76 = scmp.ne.s32.totalorder %s62, %s63
    %p77 = scmp.eq.s32.totalorder %s15, 1
    %p78 = por %p76, %p77
    %p80 = scmp.ne.s32.totalorder %s63, %s79
    %p81 = scmp.eq.s32.totalorder %s15, 0
    %p82 = por %p80, %p81
    %s83 = ssub.s32 %s16, %s28
    %p84 = scmp.eq.s32.totalorder %s83, 0
    %s86 = sadd.s32 %s85, 1
    %s87 = scalar_select %p84, %s85, %s86
    %p90 = pneg %p84
    %p91 = scmp.eq.s32.totalorder %s9, 1
    %p92 = por %p90, %p91
    %p93 = scmp.ne.s32.totalorder %s85, %s88
    %p94 = scmp.eq.s32.totalorder %s9, 0
    %p95 = por %p93, %p94
    %p96 = scmp.ne.s32.totalorder %s85, %s88
    %p97 = scmp.eq.s32.totalorder %s14, 1
    %p98 = por %p96, %p97
    %p99 = scmp.ne.s32.totalorder %s88, %s89
    %p100 = scmp.eq.s32.totalorder %s14, 0
    %p101 = por %p99, %p100
    %p102 = scmp.ne.s32.totalorder %s88, %s89
    %p103 = scmp.eq.s32.totalorder %s15, 1
    %p104 = por %p102, %p103
    %p106 = scmp.ne.s32.totalorder %s89, %s105
    %p107 = scmp.eq.s32.totalorder %s15, 0
    %p108 = por %p106, %p107
    %p109 = scmp.le.s32.totalorder 1, %s9
    %p110 = scmp.lt.s32.totalorder %s9, 3
    %p111 = pnand %p109, %p110
    %p112 = pneg %p111
    // Predicated region
    $region9: #{basic_block_2.8} parent=5 // pred_check
      _
    $region10: #{basic_block_2.8} parent=5 // pred_check_branch
      %114 = sbr.rel (%p111) target = $region12
    $region11: #{basic_block_2.8} parent=5 // pred_region
      %s115 = ssub.s32 %s9, 1
    $region12: #{basic_block_2.8} parent=5 // pred_fallthru
      _
    %p116 = scmp.lt.s32.totalorder %s9, 2
    // Predicated region
    $region13: #{basic_block_2.8} parent=5 // pred_check
      %p117 = pneg %p116
    $region14: #{basic_block_2.8} parent=5 // pred_check_branch
      %119 = sbr.rel (%p117) target = $region16
    $region15: #{basic_block_2.8} parent=5 // pred_region
      // Predicated region
      $region17: #{basic_block_2.8} parent=15 // pred_check
        %p120 = pneg %p43
      $region18: #{basic_block_2.8} parent=15 // pred_check_branch
        %122 = sbr.rel (%p120) target = $region20
      $region19: #{basic_block_2.8} parent=15 // pred_region
        %s123 = sadd.s32 %s16, %s17
        %s124 = smul.u32 4, %s123
        %p125 = scmp.lt.s32.totalorder %s124, 7
        %s126 = scalar_select %p125, %s124, 7
        %s127 = smul.addr %s126, 8
        %s128 = scalar_lea.vmem %s0, %s127
        %s129 = sadd.s32 %s16, %s17
        %s130 = smul.u32 4, %s129
      $region20: #{basic_block_2.8} parent=15 // pred_fallthru
        _
    $region16: #{basic_block_2.8} parent=5 // pred_fallthru
      _
    %p131 = scmp.le.s32.totalorder 1, %s9
    %p132 = scmp.lt.s32.totalorder %s9, 3
    %p133 = pnand %p131, %p132
    %p134 = pneg %p133
    // Predicated region
    $region21: #{basic_block_2.8} parent=5 // pred_check
      _
    $region22: #{basic_block_2.8} parent=5 // pred_check_branch
      %136 = sbr.rel (%p133) target = $region24
    $region23: #{basic_block_2.8} parent=5 // pred_region
      %s137 = ssub.s32 %s9, 1
      %s138 = sadd.s32 %s18, %s19
      %s139 = smul.u32 4, %s138
      %p140 = scmp.lt.s32.totalorder %s139, 7
      %s141 = scalar_select %p140, %s139, 7
      %s142 = smul.addr %s141, 8
      %s143 = scalar_lea.vmem %s0, %s142
      %p144 = pneg %p49
      %p145 = pneg %p46
      %p146 = pneg %p75
      %p147 = pneg %p72
      %p148 = scmp.lt.s32.totalorder %s18, 1
      %s149 = scalar_select %p148, %s18, 1
      %s150 = smul.addr %s149, 8
      %s151 = scalar_lea.vmem %s1, %s150
      %p152 = pneg %p101
      %p153 = pneg %p98
      %p154 = scmp.lt.s32.totalorder %s18, 1
      %s155 = scalar_select %p154, %s18, 1
      %s156 = smul.addr %s155, 8
      %s157 = scalar_lea.vmem %s2, %s156
      %s158 = sadd.s32 %s18, %s19
      %s159 = smul.u32 4, %s158
      %p160 = scmp.lt.s32.totalorder %s159, 7
      %s161 = scalar_select %p160, %s159, 7
      %s162 = smul.addr %s161, 8
      %s163 = scalar_lea.vmem %s0, %s162
      %s164 = sadd.s32 %s18, %s19
      %s165 = smul.u32 4, %s164
      %p166 = scmp.lt.s32.totalorder %s18, 1
      %s167 = scalar_select %p166, %s18, 1
      %s168 = smul.addr %s167, 8
      %s169 = scalar_lea.vmem %s1, %s168
      %p170 = scmp.lt.s32.totalorder %s18, 1
      %s171 = scalar_select %p170, %s18, 1
      %s172 = smul.addr %s171, 8
      %s173 = scalar_lea.vmem %s2, %s172
      %p174 = scmp.eq.s32.totalorder %s19, 0
      // Predicated region
      $region25: #{basic_block_2.8} parent=23 // pred_check
        %p175 = pneg %p174
      $region26: #{basic_block_2.8} parent=23 // pred_check_branch
        %177 = sbr.rel (%p175) target = $region28
      $region27: #{basic_block_2.8} parent=23 // pred_region
        %178 = vst [vmem:[%s169] sm:$0xff] 0.0
        %179 = vst [vmem:[%s173] sm:$0xff] 0.0
      $region28: #{basic_block_2.8} parent=23 // pred_fallthru
        _
      %v180 = vld [vmem:[%s163] sm:$0xff]
      %v181 = vld [vmem:[%s163 + $0x8] sm:$0xff]
      %v182 = vld [vmem:[%s163 + $0x10] sm:$0xff]
      %v183 = vld [vmem:[%s163 + $0x18] sm:$0xff]
      %v184 = vld [vmem:[%s169] sm:$0xff]
      %v185 = vadd.f32 %v180, %v181
      %v186 = vadd.f32 %v185, %v182
      %v187 = vadd.f32 %v186, %v183
      %v188 = vadd.f32 %v184, %v187
      %189 = vst [vmem:[%s169] sm:$0xff] %v188
      %v190 = vld [vmem:[%s173] sm:$0xff]
      %v191 = vmul.f32 %v180, %v180
      %v192 = vmul.f32 %v181, %v181
      %v193 = vmul.f32 %v182, %v182
      %v194 = vmul.f32 %v183, %v183
      %v195 = vadd.f32 %v191, %v192
      %v196 = vadd.f32 %v195, %v193
      %v197 = vadd.f32 %v196, %v194
      %v198 = vadd.f32 %v190, %v197
      %199 = vst [vmem:[%s173] sm:$0xff] %v198
      %p200 = scmp.lt.s32.totalorder %s18, 1
      %s201 = scalar_select %p200, %s18, 1
      %s202 = smul.addr %s201, 8
      %s203 = scalar_lea.vmem %s1, %s202
      %p204 = scmp.lt.s32.totalorder %s18, 1
      %s205 = scalar_select %p204, %s18, 1
      %s206 = smul.addr %s205, 8
      %s207 = scalar_lea.vmem %s2, %s206
      // Predicated region
      $region29: #{basic_block_2.8} parent=23 // pred_check
        %p208 = pneg %p72
      $region30: #{basic_block_2.8} parent=23 // pred_check_branch
        %210 = sbr.rel (%p208) target = $region32
      $region31: #{basic_block_2.8} parent=23 // pred_region
        _
      $region32: #{basic_block_2.8} parent=23 // pred_fallthru
        _
      // Predicated region
      $region33: #{basic_block_2.8} parent=23 // pred_check
        %p211 = pneg %p98
      $region34: #{basic_block_2.8} parent=23 // pred_check_branch
        %213 = sbr.rel (%p211) target = $region36
      $region35: #{basic_block_2.8} parent=23 // pred_region
        _
      $region36: #{basic_block_2.8} parent=23 // pred_fallthru
        _
    $region24: #{basic_block_2.8} parent=5 // pred_fallthru
      _
    %p214 = scmp.le.s32.totalorder 2, %s9
    // Predicated region
    $region37: #{basic_block_2.8} parent=5 // pred_check
      %p215 = pneg %p214
    $region38: #{basic_block_2.8} parent=5 // pred_check_branch
      %217 = sbr.rel (%p215) target = $region40
    $region39: #{basic_block_2.8} parent=5 // pred_region
      %s218 = ssub.s32 %s9, 2
      // Predicated region
      $region41: #{basic_block_2.8} parent=39 // pred_check
        %p219 = pneg %p78
      $region42: #{basic_block_2.8} parent=39 // pred_check_branch
        %221 = sbr.rel (%p219) target = $region44
      $region43: #{basic_block_2.8} parent=39 // pred_region
        %p222 = scmp.lt.s32.totalorder %s20, 1
        %s223 = scalar_select %p222, %s20, 1
        %s224 = smul.addr %s223, 8
        %s225 = scalar_lea.vmem %s1, %s224
      $region44: #{basic_block_2.8} parent=39 // pred_fallthru
        _
      // Predicated region
      $region45: #{basic_block_2.8} parent=39 // pred_check
        %p226 = pneg %p104
      $region46: #{basic_block_2.8} parent=39 // pred_check_branch
        %228 = sbr.rel (%p226) target = $region48
      $region47: #{basic_block_2.8} parent=39 // pred_region
        %p229 = scmp.lt.s32.totalorder %s20, 1
        %s230 = scalar_select %p229, %s20, 1
        %s231 = smul.addr %s230, 8
        %s232 = scalar_lea.vmem %s2, %s231
      $region48: #{basic_block_2.8} parent=39 // pred_fallthru
        _
    $region40: #{basic_block_2.8} parent=5 // pred_fallthru
      _
  $region6: #{basic_block_2.8} parent=0 // loop_footer
    %s13 = sadd.s32 1, %s9
  $region7: #{basic_block_2.8} parent=0 // loop_footer_branch
    %8 = sbr.rel target = $region3
  $region8: #{basic_block_2.8} parent=0 // loop_exit
    _

// kernel: tile.33
$region0: #{tile.33}
  #allocation0 [shape = 's32[1]{0}', space=sflag, size = 0x4, scoped, tag = 'scoped memory for tile.33']
  %s0 = inlined_call_operand.vmem [shape: f32[8], index: 0, kind: input, shape index: {}]
  %s1 = inlined_call_operand.vmem [shape: f32[16,8], index: 1, kind: output, shape index: {}]
  // Predicated region
  $region2: #{tile.33} parent=0 // pred_check
    _
  $region3: #{tile.33} parent=0 // pred_check_branch
    %3 = sbr.rel (0) target = $region5
  $region4: #{tile.33} parent=0 // pred_region
    _
  $region5: #{tile.33} parent=0 // pred_fallthru
    _
  %v4 = vld [vmem:[%s0] ss:$0 sm:$0xff]
  %5 = vst [vmem:[%s1] sm:$0xff] %v4
  %s6 = scalar_lea.vmem %s1, 8
  %7 = vst [vmem:[%s6] sm:$0xff] %v4

// kernel: tile.34
$region0: #{tile.34}
  %s0 = inlined_call_operand.vmem [shape: f32[16,8], index: 0, kind: input, shape index: {}]
  %s1 = inlined_call_operand.vmem [shape: f32[1,128], index: 1, kind: output, shape index: {}]
  $region1: #{tile.34} parent=0
    #allocation0 [shape = 'u8[4096]{0}', space=vmem, size = 0x1000, scoped, tag = 'scoped mem for output reshape']
    %v2 = vld [vmem:[%s0] sm:$0x1]
    %vm3 = vcmask 64512
    %4 = vst.msk [vmem:[#allocation0] sm:$0x1] %vm3, %v2
    %s5 = scalar_lea.vmem %s0, 15
    %v6 = vld [vmem:[%s5] sm:$0x1]
    %7 = vrot.lane.b32.xlu0 %v6, 120
    %v8 = vpop.permute.xlu0 %7
    %vm9 = vcmask 1048512
    %10 = vst.msk [vmem:[#allocation0] sm:$0x1] %vm9, %v8
    %s11 = scalar_lea.vmem %s0, 14
    %v12 = vld [vmem:[%s11] sm:$0x1]
    %13 = vrot.lane.b32.xlu0 %v12, 112
    %v14 = vpop.permute.xlu0 %13
    %vm15 = vcmask 982912
    %16 = vst.msk [vmem:[#allocation0] sm:$0x1] %vm15, %v14
    %s17 = scalar_lea.vmem %s0, 13
    %v18 = vld [vmem:[%s17] sm:$0x1]
    %19 = vrot.lane.b32.xlu0 %v18, 104
    %v20 = vpop.permute.xlu0 %19
    %vm21 = vcmask 917312
    %22 = vst.msk [vmem:[#allocation0] sm:$0x1] %vm21, %v20
    %s23 = scalar_lea.vmem %s0, 12
    %v24 = vld [vmem:[%s23] sm:$0x1]
    %25 = vrot.lane.b32.xlu0 %v24, 96
    %v26 = vpop.permute.xlu0 %25
    %vm27 = vcmask 851712
    %28 = vst.msk [vmem:[#allocation0] sm:$0x1] %vm27, %v26
    %s29 = scalar_lea.vmem %s0, 11
    %v30 = vld [vmem:[%s29] sm:$0x1]
    %31 = vrot.lane.b32.xlu0 %v30, 88
    %v32 = vpop.permute.xlu0 %31
    %vm33 = vcmask 786112
    %34 = vst.msk [vmem:[#allocation0] sm:$0x1] %vm33, %v32
    %s35 = scalar_lea.vmem %s0, 10
    %v36 = vld [vmem:[%s35] sm:$0x1]
    %37 = vrot.lane.b32.xlu0 %v36, 80
    %v38 = vpop.permute.xlu0 %37
    %vm39 = vcmask 720512
    %40 = vst.msk [vmem:[#allocation0] sm:$0x1] %vm39, %v38
    %s41 = scalar_lea.vmem %s0, 9
    %v42 = vld [vmem:[%s41] sm:$0x1]
    %43 = vrot.lane.b32.xlu0 %v42, 72
    %v44 = vpop.permute.xlu0 %43
    %vm45 = vcmask 654912
    %46 = vst.msk [vmem:[#allocation0] sm:$0x1] %vm45, %v44
    %s47 = scalar_lea.vmem %s0, 8
    %v48 = vld [vmem:[%s47] sm:$0x1]
    %49 = vrot.lane.b32.xlu0 %v48, 64
    %v50 = vpop.permute.xlu0 %49
    %vm51 = vcmask 589312
    %52 = vst.msk [vmem:[#allocation0] sm:$0x1] %vm51, %v50
    %s53 = scalar_lea.vmem %s0, 7
    %v54 = vld [vmem:[%s53] sm:$0x1]
    %55 = vrot.lane.b32.xlu0 %v54, 56
    %v56 = vpop.permute.xlu0 %55
    %vm57 = vcmask 523712
    %58 = vst.msk [vmem:[#allocation0] sm:$0x1] %vm57, %v56
    %s59 = scalar_lea.vmem %s0, 6
    %v60 = vld [vmem:[%s59] sm:$0x1]
    %61 = vrot.lane.b32.xlu0 %v60, 48
    %v62 = vpop.permute.xlu0 %61
    %vm63 = vcmask 458112
    %64 = vst.msk [vmem:[#allocation0] sm:$0x1] %vm63, %v62
    %s65 = scalar_lea.vmem %s0, 5
    %v66 = vld [vmem:[%s65] sm:$0x1]
    %67 = vrot.lane.b32.xlu0 %v66, 40
    %v68 = vpop.permute.xlu0 %67
    %vm69 = vcmask 392512
    %70 = vst.msk [vmem:[#allocation0] sm:$0x1] %vm69, %v68
    %s71 = scalar_lea.vmem %s0, 4
    %v72 = vld [vmem:[%s71] sm:$0x1]
    %73 = vrot.lane.b32.xlu0 %v72, 32
    %v74 = vpop.permute.xlu0 %73
    %vm75 = vcmask 326912
    %76 = vst.msk [vmem:[#allocation0] sm:$0x1] %vm75, %v74
    %s77 = scalar_lea.vmem %s0, 3
    %v78 = vld [vmem:[%s77] sm:$0x1]
    %79 = vrot.lane.b32.xlu0 %v78, 24
    %v80 = vpop.permute.xlu0 %79
    %vm81 = vcmask 261312
    %82 = vst.msk [vmem:[#allocation0] sm:$0x1] %vm81, %v80
    %s83 = scalar_lea.vmem %s0, 2
    %v84 = vld [vmem:[%s83] sm:$0x1]
    %85 = vrot.lane.b32.xlu0 %v84, 16
    %v86 = vpop.permute.xlu0 %85
    %vm87 = vcmask 195712
    %88 = vst.msk [vmem:[#allocation0] sm:$0x1] %vm87, %v86
    %s89 = scalar_lea.vmem %s0, 1
    %v90 = vld [vmem:[%s89] sm:$0x1]
    %91 = vrot.lane.b32.xlu0 %v90, 8
    %v92 = vpop.permute.xlu0 %91
    %vm93 = vcmask 130112
    %94 = vst.msk [vmem:[#allocation0] sm:$0x1] %vm93, %v92
    %s96 = sshllo.u32 0, 1
    %v98 = vld [vmem:[#allocation0] sm:%s96]
    %s99 = sshllo.u32 0, 1
    %100 = vst [vmem:[%s1] sm:%s99] %v98

// kernel: basic_block_2.9
$region0: #{basic_block_2.9}
  #allocation0 [shape = 'u32[]', space=smem, size = 0x4, offset = 0x4, fixed_abs, tag = 'smem constant byte address 0x4 - core index']
  #allocation1 [shape = 'u32[144,128]{1,0:T(1,128)}', space=vmem, size = 0x12000, scoped, tag = 'internal scratch']
  %s0 = inlined_call_operand.vmem [shape: f32[5,16,128], index: 0, kind: input, shape index: {}]
  %s1 = inlined_call_operand.vmem [shape: f32[1,128], index: 1, kind: input, shape index: {}]
  %s2 = inlined_call_operand.vmem [shape: f32[1,128], index: 2, kind: input, shape index: {}]
  %s3 = inlined_call_operand.vmem [shape: bf16[5,16,128], index: 3, kind: output, shape index: {}]
  %s4 = sld [smem:[#allocation0]]
  $region22: #{basic_block_2.9} parent=0
    _
  %s6 = ssub.s32 1, %s4
  %s7 = scalar_select 0, %s6, %s4
  // Predicated region
  $region2: #{basic_block_2.9} parent=0 // pred_check
    _
  $region3: #{basic_block_2.9} parent=0 // pred_check_branch
    %9 = sbr.rel (0) target = $region5
  $region4: #{basic_block_2.9} parent=0 // pred_region
    _
  $region5: #{basic_block_2.9} parent=0 // pred_fallthru
    _
  // Predicated region
  $region6: #{basic_block_2.9} parent=0 // pred_check
    _
  $region7: #{basic_block_2.9} parent=0 // pred_check_branch
    %11 = sbr.rel (0) target = $region9
  $region8: #{basic_block_2.9} parent=0 // pred_region
    _
  $region9: #{basic_block_2.9} parent=0 // pred_fallthru
    _
  // Predicated region
  $region10: #{basic_block_2.9} parent=0 // pred_check
    _
  $region11: #{basic_block_2.9} parent=0 // pred_check_branch
    %13 = sbr.rel (0) target = $region13
  $region12: #{basic_block_2.9} parent=0 // pred_region
    _
  $region13: #{basic_block_2.9} parent=0 // pred_fallthru
    _
  %v14 = vld [vmem:[%s1] sm:$0x1]
  %v15 = vld [vmem:[%s2] sm:$0x1]
  %v16 = vld [vmem:[%s0] sm:$0xff]
  %v17 = vld [vmem:[%s0 + $0x8] sm:$0xff]
  %v19 = vlaneseq
  %v20 = vshrl.u32 %v19, 7
  %v21 = vsub.s32 0, %v20
  %v22 = vrot.slane %v14, %v21
  %v24 = vmul.f32 %v16, %v22
  %v25 = vmul.f32 %v17, %v22
  %v27 = vlaneseq
  %v28 = vshrl.u32 %v27, 7
  %v29 = vsub.s32 0, %v28
  %v30 = vrot.slane %v15, %v29
  %v32 = vadd.f32 %v24, %v30
  %v33 = vadd.f32 %v25, %v30
  %vm34 = vcmp.gt.f32.partialorder %v32, 0.5
  %vm35 = vcmp.gt.f32.partialorder %v33, 0.5
  %v36 = vsel %vm34, 1, 0
  %v37 = vsel %vm35, 1, 0
  %v38 = vcvt.s32.f32 %v36
  %v39 = vcvt.s32.f32 %v37
  %v40 = vpack.c.bf16 %v39, %v38
  %v42 = vunpack.c.l.b16 %v40
  %v43 = vunpack.c.h.b16 %v40
  %v44 = vpack.c.b16 %v42, %v42
  %v45 = vpack.c.b16 %v43, %v43
  %48 = vst [vmem:[%s3] sm:$0xf] %v44
  %49 = vst [vmem:[%s3 + $0x4] sm:$0xf] %v45
  %v50 = vmul.f32 %v32, 0.25
  %v51 = vmul.f32 %v33, 0.25
  %v52 = vsel %vm34, 0.0, %v50
  %v53 = vsel %vm35, 0.0, %v51
  %s54 = sadd.s32 0, 16
  %s55 = scalar_lea.vmem %s0, %s54
  %v56 = vld [vmem:[%s55] sm:$0xff]
  %v57 = vld [vmem:[%s55 + $0x8] sm:$0xff]
  %v58 = vmul.f32 %v56, %v22
  %v59 = vmul.f32 %v57, %v22
  %v60 = vadd.f32 %v58, %v30
  %v61 = vadd.f32 %v59, %v30
  %v62 = vadd.f32 %v52, %v60
  %v63 = vadd.f32 %v53, %v61
  %vm64 = vcmp.gt.f32.partialorder %v62, 0.5
  %vm65 = vcmp.gt.f32.partialorder %v63, 0.5
  %v66 = vsel %vm64, 1, 0
  %v67 = vsel %vm65, 1, 0
  %v68 = vcvt.s32.f32 %v66
  %v69 = vcvt.s32.f32 %v67
  %v70 = vpack.c.bf16 %v69, %v68
  %v72 = vunpack.c.l.b16 %v70
  %v73 = vunpack.c.h.b16 %v70
  %v74 = vpack.c.b16 %v72, %v72
  %v75 = vpack.c.b16 %v73, %v73
  %s78 = sadd.s32 0, 2
  %s79 = smul.addr %s78, 4
  %s80 = scalar_lea.vmem %s3, %s79
  %81 = vst [vmem:[%s80] sm:$0xf] %v74
  %82 = vst [vmem:[%s80 + $0x4] sm:$0xf] %v75
  %v83 = vmul.f32 %v62, 0.25
  %v84 = vmul.f32 %v63, 0.25
  %v85 = vsel %vm64, 0.0, %v83
  %v86 = vsel %vm65, 0.0, %v84
  %s87 = sadd.s32 0, 32
  %s88 = scalar_lea.vmem %s0, %s87
  %v89 = vld [vmem:[%s88] sm:$0xff]
  %v90 = vld [vmem:[%s88 + $0x8] sm:$0xff]
  %v91 = vmul.f32 %v89, %v22
  %v92 = vmul.f32 %v90, %v22
  %v93 = vadd.f32 %v91, %v30
  %v94 = vadd.f32 %v92, %v30
  %v95 = vadd.f32 %v85, %v93
  %v96 = vadd.f32 %v86, %v94
  %vm97 = vcmp.gt.f32.partialorder %v95, 0.5
  %vm98 = vcmp.gt.f32.partialorder %v96, 0.5
  %v99 = vsel %vm97, 1, 0
  %v100 = vsel %vm98, 1, 0
  %v101 = vcvt.s32.f32 %v99
  %v102 = vcvt.s32.f32 %v100
  %v103 = vpack.c.bf16 %v102, %v101
  %v105 = vunpack.c.l.b16 %v103
  %v106 = vunpack.c.h.b16 %v103
  %v107 = vpack.c.b16 %v105, %v105
  %v108 = vpack.c.b16 %v106, %v106
  %s111 = sadd.s32 0, 4
  %s112 = smul.addr %s111, 4
  %s113 = scalar_lea.vmem %s3, %s112
  %114 = vst [vmem:[%s113] sm:$0xf] %v107
  %115 = vst [vmem:[%s113 + $0x4] sm:$0xf] %v108
  %v116 = vmul.f32 %v95, 0.25
  %v117 = vmul.f32 %v96, 0.25
  %v118 = vsel %vm97, 0.0, %v116
  %v119 = vsel %vm98, 0.0, %v117
  %s120 = sadd.s32 0, 48
  %s121 = scalar_lea.vmem %s0, %s120
  %v122 = vld [vmem:[%s121] sm:$0xff]
  %v123 = vld [vmem:[%s121 + $0x8] sm:$0xff]
  %v124 = vmul.f32 %v122, %v22
  %v125 = vmul.f32 %v123, %v22
  %v126 = vadd.f32 %v124, %v30
  %v127 = vadd.f32 %v125, %v30
  %v128 = vadd.f32 %v118, %v126
  %v129 = vadd.f32 %v119, %v127
  %vm130 = vcmp.gt.f32.partialorder %v128, 0.5
  %vm131 = vcmp.gt.f32.partialorder %v129, 0.5
  %v132 = vsel %vm130, 1, 0
  %v133 = vsel %vm131, 1, 0
  %v134 = vcvt.s32.f32 %v132
  %v135 = vcvt.s32.f32 %v133
  %v136 = vpack.c.bf16 %v135, %v134
  %v138 = vunpack.c.l.b16 %v136
  %v139 = vunpack.c.h.b16 %v136
  %v140 = vpack.c.b16 %v138, %v138
  %v141 = vpack.c.b16 %v139, %v139
  %s144 = sadd.s32 0, 6
  %s145 = smul.addr %s144, 4
  %s146 = scalar_lea.vmem %s3, %s145
  %147 = vst [vmem:[%s146] sm:$0xf] %v140
  %148 = vst [vmem:[%s146 + $0x4] sm:$0xf] %v141
  %v149 = vmul.f32 %v128, 0.25
  %v150 = vmul.f32 %v129, 0.25
  %v151 = vsel %vm130, 0.0, %v149
  %v152 = vsel %vm131, 0.0, %v150
  %s153 = sadd.s32 0, 64
  %s154 = scalar_lea.vmem %s0, %s153
  %v155 = vld [vmem:[%s154] sm:$0xff]
  %v156 = vld [vmem:[%s154 + $0x8] sm:$0xff]
  %v157 = vmul.f32 %v155, %v22
  %v158 = vmul.f32 %v156, %v22
  %v159 = vadd.f32 %v157, %v30
  %v160 = vadd.f32 %v158, %v30
  %v161 = vadd.f32 %v151, %v159
  %v162 = vadd.f32 %v152, %v160
  %vm163 = vcmp.gt.f32.partialorder %v161, 0.5
  %vm164 = vcmp.gt.f32.partialorder %v162, 0.5
  %v165 = vsel %vm163, 1, 0
  %v166 = vsel %vm164, 1, 0
  %v167 = vcvt.s32.f32 %v165
  %v168 = vcvt.s32.f32 %v166
  %v169 = vpack.c.bf16 %v168, %v167
  %v171 = vunpack.c.l.b16 %v169
  %v172 = vunpack.c.h.b16 %v169
  %v173 = vpack.c.b16 %v171, %v171
  %v174 = vpack.c.b16 %v172, %v172
  %s177 = sadd.s32 0, 8
  %s178 = smul.addr %s177, 4
  %s179 = scalar_lea.vmem %s3, %s178
  %180 = vst [vmem:[%s179] sm:$0xf] %v173
  %181 = vst [vmem:[%s179 + $0x4] sm:$0xf] %v174
  // Predicated region
  $region14: #{basic_block_2.9} parent=0 // pred_check
    _
  $region15: #{basic_block_2.9} parent=0 // pred_check_branch
    %183 = sbr.rel (0) target = $region17
  $region16: #{basic_block_2.9} parent=0 // pred_region
    _
  $region17: #{basic_block_2.9} parent=0 // pred_fallthru
    _
  // Predicated region
  $region18: #{basic_block_2.9} parent=0 // pred_check
    _
  $region19: #{basic_block_2.9} parent=0 // pred_check_branch
    %185 = sbr.rel (0) target = $region21
  $region20: #{basic_block_2.9} parent=0 // pred_region
    _
  $region21: #{basic_block_2.9} parent=0 // pred_fallthru
    _

// kernel: basic_block_2.13
$region0: #{basic_block_2.13}
  #allocation0 [shape = 'u32[]', space=smem, size = 0x4, offset = 0x4, fixed_abs, tag = 'smem constant byte address 0x4 - core index']
  #allocation1 [shape = 'u32[144,128]{1,0:T(1,128)}', space=vmem, size = 0x12000, scoped, tag = 'internal scratch']
  %s0 = inlined_call_operand.vmem [shape: f32[64,128], index: 0, kind: input, shape index: {}]
  %s1 = inlined_call_operand.vmem [shape: f32[64,128], index: 1, kind: input, shape index: {}]
  %s2 = inlined_call_operand.vmem [shape: f32[1,128], index: 2, kind: input, shape index: {}]
  %s3 = inlined_call_operand.vmem [shape: f32[1,128], index: 3, kind: input, shape index: {}]
  %s4 = inlined_call_operand.vmem [shape: f32[1,128], index: 4, kind: input, shape index: {}]
  %s5 = inlined_call_operand.vmem [shape: f32[1,128], index: 5, kind: input, shape index: {}]
  %s6 = inlined_call_operand.vmem [shape: f32[64,128], index: 6, kind: output, shape index: {}]
  %s7 = sld [smem:[#allocation0]]
  $region57: #{basic_block_2.13} parent=0
    _
  %s9 = ssub.s32 1, %s7
  %s10 = scalar_select 0, %s9, %s7
  loop: start=0, step=1, limit=4
  $region2: #{basic_block_2.13} parent=0 // loop_pre_header
    _
  $region3: #{basic_block_2.13} parent=0 // loop_header
    %s12 = sphi 0, %s16
    %p13 = scmp.ge.s32.totalorder %s12, 4
    %s22 = sphi 0, %s24
    %s25 = sphi 0, %s22
    %s26 = sphi 0, %s25
    %s42 = sphi 0, %s26
    %s48 = sphi 0, %s50
    %s51 = sphi 0, %s48
    %s52 = sphi 0, %s51
    %s68 = sphi 0, %s52
    %s72 = sphi 0, %s72
    %s74 = sphi 0, %s72
    %s75 = sphi 0, %s74
    %s89 = sphi 0, %s75
    %s93 = sphi 0, %s93
    %s95 = sphi 0, %s93
    %s96 = sphi 0, %s95
    %s110 = sphi 0, %s96
    %s114 = sphi 0, %s114
    %s116 = sphi 0, %s114
    %s117 = sphi 0, %s116
    %s131 = sphi 0, %s117
    %s135 = sphi 0, %s135
    %s137 = sphi 0, %s135
    %s138 = sphi 0, %s137
    %s152 = sphi 0, %s138
    %s158 = sphi 0, %s160
    %s161 = sphi 0, %s158
    %s162 = sphi 0, %s161
    %s178 = sphi 0, %s162
  $region4: #{basic_block_2.13} parent=0 // loop_header_branch
    %15 = sbr.rel (%p13) target = $region8
  $region5: #{basic_block_2.13} parent=0 // loop_body
    %s17 = ssub.s32 %s12, 1
    %s18 = ssub.s32 %s12, 2
    %s19 = sadd.s32 %s12, 1
    %s20 = ssub.s32 %s12, %s19
    %p21 = scmp.eq.s32.totalorder %s20, 0
    %s23 = sadd.s32 %s22, 1
    %s24 = scalar_select %p21, %s22, %s23
    %p27 = pneg %p21
    %p28 = scmp.eq.s32.totalorder %s12, 1
    %p29 = por %p27, %p28
    %p30 = scmp.ne.s32.totalorder %s22, %s25
    %p31 = scmp.eq.s32.totalorder %s12, 0
    %p32 = por %p30, %p31
    %p33 = scmp.ne.s32.totalorder %s22, %s25
    %p34 = scmp.eq.s32.totalorder %s17, 1
    %p35 = por %p33, %p34
    %p36 = scmp.ne.s32.totalorder %s25, %s26
    %p37 = scmp.eq.s32.totalorder %s17, 0
    %p38 = por %p36, %p37
    %p39 = scmp.ne.s32.totalorder %s25, %s26
    %p40 = scmp.eq.s32.totalorder %s18, 1
    %p41 = por %p39, %p40
    %p43 = scmp.ne.s32.totalorder %s26, %s42
    %p44 = scmp.eq.s32.totalorder %s18, 0
    %p45 = por %p43, %p44
    %s46 = ssub.s32 %s12, %s19
    %p47 = scmp.eq.s32.totalorder %s46, 0
    %s49 = sadd.s32 %s48, 1
    %s50 = scalar_select %p47, %s48, %s49
    %p53 = pneg %p47
    %p54 = scmp.eq.s32.totalorder %s12, 1
    %p55 = por %p53, %p54
    %p56 = scmp.ne.s32.totalorder %s48, %s51
    %p57 = scmp.eq.s32.totalorder %s12, 0
    %p58 = por %p56, %p57
    %p59 = scmp.ne.s32.totalorder %s48, %s51
    %p60 = scmp.eq.s32.totalorder %s17, 1
    %p61 = por %p59, %p60
    %p62 = scmp.ne.s32.totalorder %s51, %s52
    %p63 = scmp.eq.s32.totalorder %s17, 0
    %p64 = por %p62, %p63
    %p65 = scmp.ne.s32.totalorder %s51, %s52
    %p66 = scmp.eq.s32.totalorder %s18, 1
    %p67 = por %p65, %p66
    %p69 = scmp.ne.s32.totalorder %s52, %s68
    %p70 = scmp.eq.s32.totalorder %s18, 0
    %p71 = por %p69, %p70
    %s73 = sadd.s32 %s72, 1
    %p76 = scmp.eq.s32.totalorder %s12, 1
    %p77 = scmp.ne.s32.totalorder %s72, %s74
    %p78 = scmp.eq.s32.totalorder %s12, 0
    %p79 = por %p77, %p78
    %p80 = scmp.ne.s32.totalorder %s72, %s74
    %p81 = scmp.eq.s32.totalorder %s17, 1
    %p82 = por %p80, %p81
    %p83 = scmp.ne.s32.totalorder %s74, %s75
    %p84 = scmp.eq.s32.totalorder %s17, 0
    %p85 = por %p83, %p84
    %p86 = scmp.ne.s32.totalorder %s74, %s75
    %p87 = scmp.eq.s32.totalorder %s18, 1
    %p88 = por %p86, %p87
    %p90 = scmp.ne.s32.totalorder %s75, %s89
    %p91 = scmp.eq.s32.totalorder %s18, 0
    %p92 = por %p90, %p91
    %s94 = sadd.s32 %s93, 1
    %p97 = scmp.eq.s32.totalorder %s12, 1
    %p98 = scmp.ne.s32.totalorder %s93, %s95
    %p99 = scmp.eq.s32.totalorder %s12, 0
    %p100 = por %p98, %p99
    %p101 = scmp.ne.s32.totalorder %s93, %s95
    %p102 = scmp.eq.s32.totalorder %s17, 1
    %p103 = por %p101, %p102
    %p104 = scmp.ne.s32.totalorder %s95, %s96
    %p105 = scmp.eq.s32.totalorder %s17, 0
    %p106 = por %p104, %p105
    %p107 = scmp.ne.s32.totalorder %s95, %s96
    %p108 = scmp.eq.s32.totalorder %s18, 1
    %p109 = por %p107, %p108
    %p111 = scmp.ne.s32.totalorder %s96, %s110
    %p112 = scmp.eq.s32.totalorder %s18, 0
    %p113 = por %p111, %p112
    %s115 = sadd.s32 %s114, 1
    %p118 = scmp.eq.s32.totalorder %s12, 1
    %p119 = scmp.ne.s32.totalorder %s114, %s116
    %p120 = scmp.eq.s32.totalorder %s12, 0
    %p121 = por %p119, %p120
    %p122 = scmp.ne.s32.totalorder %s114, %s116
    %p123 = scmp.eq.s32.totalorder %s17, 1
    %p124 = por %p122, %p123
    %p125 = scmp.ne.s32.totalorder %s116, %s117
    %p126 = scmp.eq.s32.totalorder %s17, 0
    %p127 = por %p125, %p126
    %p128 = scmp.ne.s32.totalorder %s116, %s117
    %p129 = scmp.eq.s32.totalorder %s18, 1
    %p130 = por %p128, %p129
    %p132 = scmp.ne.s32.totalorder %s117, %s131
    %p133 = scmp.eq.s32.totalorder %s18, 0
    %p134 = por %p132, %p133
    %s136 = sadd.s32 %s135, 1
    %p139 = scmp.eq.s32.totalorder %s12, 1
    %p140 = scmp.ne.s32.totalorder %s135, %s137
    %p141 = scmp.eq.s32.totalorder %s12, 0
    %p142 = por %p140, %p141
    %p143 = scmp.ne.s32.totalorder %s135, %s137
    %p144 = scmp.eq.s32.totalorder %s17, 1
    %p145 = por %p143, %p144
    %p146 = scmp.ne.s32.totalorder %s137, %s138
    %p147 = scmp.eq.s32.totalorder %s17, 0
    %p148 = por %p146, %p147
    %p149 = scmp.ne.s32.totalorder %s137, %s138
    %p150 = scmp.eq.s32.totalorder %s18, 1
    %p151 = por %p149, %p150
    %p153 = scmp.ne.s32.totalorder %s138, %s152
    %p154 = scmp.eq.s32.totalorder %s18, 0
    %p155 = por %p153, %p154
    %s156 = ssub.s32 %s12, %s19
    %p157 = scmp.eq.s32.totalorder %s156, 0
    %s159 = sadd.s32 %s158, 1
    %s160 = scalar_select %p157, %s158, %s159
    %p163 = pneg %p157
    %p164 = scmp.eq.s32.totalorder %s12, 1
    %p165 = por %p163, %p164
    %p166 = scmp.ne.s32.totalorder %s158, %s161
    %p167 = scmp.eq.s32.totalorder %s12, 0
    %p168 = por %p166, %p167
    %p169 = scmp.ne.s32.totalorder %s158, %s161
    %p170 = scmp.eq.s32.totalorder %s17, 1
    %p171 = por %p169, %p170
    %p172 = scmp.ne.s32.totalorder %s161, %s162
    %p173 = scmp.eq.s32.totalorder %s17, 0
    %p174 = por %p172, %p173
    %p175 = scmp.ne.s32.totalorder %s161, %s162
    %p176 = scmp.eq.s32.totalorder %s18, 1
    %p177 = por %p175, %p176
    %p179 = scmp.ne.s32.totalorder %s162, %s178
    %p180 = scmp.eq.s32.totalorder %s18, 0
    %p181 = por %p179, %p180
    %p182 = scmp.le.s32.totalorder 1, %s12
    %p183 = scmp.lt.s32.totalorder %s12, 3
    %p184 = pnand %p182, %p183
    %p185 = pneg %p184
    // Predicated region
    $region9: #{basic_block_2.13} parent=5 // pred_check
      _
    $region10: #{basic_block_2.13} parent=5 // pred_check_branch
      %187 = sbr.rel (%p184) target = $region12
    $region11: #{basic_block_2.13} parent=5 // pred_region
      %s188 = ssub.s32 %s12, 1
      // Predicated region
      $region13: #{basic_block_2.13} parent=11 // pred_check
        %p189 = pneg %p85
      $region14: #{basic_block_2.13} parent=11 // pred_check_branch
        %191 = sbr.rel (%p189) target = $region16
      $region15: #{basic_block_2.13} parent=11 // pred_region
        _
      $region16: #{basic_block_2.13} parent=11 // pred_fallthru
        _
      // Predicated region
      $region17: #{basic_block_2.13} parent=11 // pred_check
        %p192 = pneg %p106
      $region18: #{basic_block_2.13} parent=11 // pred_check_branch
        %194 = sbr.rel (%p192) target = $region20
      $region19: #{basic_block_2.13} parent=11 // pred_region
        _
      $region20: #{basic_block_2.13} parent=11 // pred_fallthru
        _
      // Predicated region
      $region21: #{basic_block_2.13} parent=11 // pred_check
        %p195 = pneg %p127
      $region22: #{basic_block_2.13} parent=11 // pred_check_branch
        %197 = sbr.rel (%p195) target = $region24
      $region23: #{basic_block_2.13} parent=11 // pred_region
        _
      $region24: #{basic_block_2.13} parent=11 // pred_fallthru
        _
      // Predicated region
      $region25: #{basic_block_2.13} parent=11 // pred_check
        %p198 = pneg %p148
      $region26: #{basic_block_2.13} parent=11 // pred_check_branch
        %200 = sbr.rel (%p198) target = $region28
      $region27: #{basic_block_2.13} parent=11 // pred_region
        _
      $region28: #{basic_block_2.13} parent=11 // pred_fallthru
        _
    $region12: #{basic_block_2.13} parent=5 // pred_fallthru
      _
    %p201 = scmp.lt.s32.totalorder %s12, 2
    // Predicated region
    $region29: #{basic_block_2.13} parent=5 // pred_check
      %p202 = pneg %p201
    $region30: #{basic_block_2.13} parent=5 // pred_check_branch
      %204 = sbr.rel (%p202) target = $region32
    $region31: #{basic_block_2.13} parent=5 // pred_region
      // Predicated region
      $region33: #{basic_block_2.13} parent=31 // pred_check
        %p205 = pneg %p32
      $region34: #{basic_block_2.13} parent=31 // pred_check_branch
        %207 = sbr.rel (%p205) target = $region36
      $region35: #{basic_block_2.13} parent=31 // pred_region
        %s208 = smul.u32 4, %s12
        %p209 = scmp.lt.s32.totalorder %s208, 7
        %s210 = scalar_select %p209, %s208, 7
        %s211 = smul.addr %s210, 8
        %s212 = scalar_lea.vmem %s0, %s211
        %s213 = smul.u32 4, %s12
      $region36: #{basic_block_2.13} parent=31 // pred_fallthru
        _
      // Predicated region
      $region37: #{basic_block_2.13} parent=31 // pred_check
        %p214 = pneg %p58
      $region38: #{basic_block_2.13} parent=31 // pred_check_branch
        %216 = sbr.rel (%p214) target = $region40
      $region39: #{basic_block_2.13} parent=31 // pred_region
        %s217 = smul.u32 4, %s12
        %p218 = scmp.lt.s32.totalorder %s217, 7
        %s219 = scalar_select %p218, %s217, 7
        %s220 = smul.addr %s219, 8
        %s221 = scalar_lea.vmem %s1, %s220
        %s222 = smul.u32 4, %s12
      $region40: #{basic_block_2.13} parent=31 // pred_fallthru
        _
    $region32: #{basic_block_2.13} parent=5 // pred_fallthru
      _
    %p223 = scmp.le.s32.totalorder 1, %s12
    %p224 = scmp.lt.s32.totalorder %s12, 3
    %p225 = pnand %p223, %p224
    %p226 = pneg %p225
    // Predicated region
    $region41: #{basic_block_2.13} parent=5 // pred_check
      _
    $region42: #{basic_block_2.13} parent=5 // pred_check_branch
      %228 = sbr.rel (%p225) target = $region44
    $region43: #{basic_block_2.13} parent=5 // pred_region
      %s229 = ssub.s32 %s12, 1
      %s230 = smul.u32 4, %s17
      %p231 = scmp.lt.s32.totalorder %s230, 7
      %s232 = scalar_select %p231, %s230, 7
      %s233 = smul.addr %s232, 8
      %s234 = scalar_lea.vmem %s0, %s233
      %p235 = pneg %p38
      %p236 = pneg %p35
      %s237 = smul.u32 4, %s17
      %p238 = scmp.lt.s32.totalorder %s237, 7
      %s239 = scalar_select %p238, %s237, 7
      %s240 = smul.addr %s239, 8
      %s241 = scalar_lea.vmem %s1, %s240
      %p242 = pneg %p64
      %p243 = pneg %p61
      %p244 = pneg %p85
      %p245 = pneg %p82
      %p246 = pneg %p106
      %p247 = pneg %p103
      %p248 = pneg %p127
      %p249 = pneg %p124
      %p250 = pneg %p148
      %p251 = pneg %p145
      %p252 = pneg %p174
      %p253 = pneg %p171
      %s254 = smul.u32 4, %s17
      %p255 = scmp.lt.s32.totalorder %s254, 7
      %s256 = scalar_select %p255, %s254, 7
      %s257 = smul.addr %s256, 8
      %s258 = scalar_lea.vmem %s6, %s257
      %s259 = smul.u32 4, %s17
      %p260 = scmp.lt.s32.totalorder %s259, 7
      %s261 = scalar_select %p260, %s259, 7
      %s262 = smul.addr %s261, 8
      %s263 = scalar_lea.vmem %s0, %s262
      %s264 = smul.u32 4, %s17
      %s265 = smul.u32 4, %s17
      %p266 = scmp.lt.s32.totalorder %s265, 7
      %s267 = scalar_select %p266, %s265, 7
      %s268 = smul.addr %s267, 8
      %s269 = scalar_lea.vmem %s1, %s268
      %s270 = smul.u32 4, %s17
      %s271 = smul.u32 4, %s17
      %p272 = scmp.lt.s32.totalorder %s271, 7
      %s273 = scalar_select %p272, %s271, 7
      %s274 = smul.addr %s273, 8
      %s275 = scalar_lea.vmem %s6, %s274
      %s276 = smul.u32 4, %s17
      %v277 = vld [vmem:[%s263] sm:$0xff]
      %v278 = vld [vmem:[%s263 + $0x8] sm:$0xff]
      %v279 = vld [vmem:[%s263 + $0x10] sm:$0xff]
      %v280 = vld [vmem:[%s263 + $0x18] sm:$0xff]
      %v281 = vld [vmem:[%s2] sm:$0x1]
      %v283 = vlaneseq
      %v284 = vshrl.u32 %v283, 7
      %v285 = vsub.s32 0, %v284
      %v286 = vrot.slane %v281, %v285
      %v288 = vmul.f32 %v277, %v286
      %v289 = vmul.f32 %v278, %v286
      %v290 = vmul.f32 %v279, %v286
      %v291 = vmul.f32 %v280, %v286
      %v292 = vld [vmem:[%s3] sm:$0x1]
      %v294 = vlaneseq
      %v295 = vshrl.u32 %v294, 7
      %v296 = vsub.s32 0, %v295
      %v297 = vrot.slane %v292, %v296
      %v299 = vadd.f32 %v288, %v297
      %v300 = vadd.f32 %v289, %v297
      %v301 = vadd.f32 %v290, %v297
      %v302 = vadd.f32 %v291, %v297
      %v303 = vld [vmem:[%s269] sm:$0xff]
      %v304 = vld [vmem:[%s269 + $0x8] sm:$0xff]
      %v305 = vld [vmem:[%s269 + $0x10] sm:$0xff]
      %v306 = vld [vmem:[%s269 + $0x18] sm:$0xff]
      %v307 = vld [vmem:[%s4] sm:$0x1]
      %v309 = vlaneseq
      %v310 = vshrl.u32 %v309, 7
      %v311 = vsub.s32 0, %v310
      %v312 = vrot.slane %v307, %v311
      %v314 = vmul.f32 %v303, %v312
      %v315 = vmul.f32 %v304, %v312
      %v316 = vmul.f32 %v305, %v312
      %v317 = vmul.f32 %v306, %v312
      %v318 = vadd.f32 %v299, %v314
      %v319 = vadd.f32 %v300, %v315
      %v320 = vadd.f32 %v301, %v316
      %v321 = vadd.f32 %v302, %v317
      %v322 = vld [vmem:[%s5] sm:$0x1]
      %v324 = vlaneseq
      %v325 = vshrl.u32 %v324, 7
      %v326 = vsub.s32 0, %v325
      %v327 = vrot.slane %v322, %v326
      %v329 = vadd.f32 %v318, %v327
      %v330 = vadd.f32 %v319, %v327
      %v331 = vadd.f32 %v320, %v327
      %v332 = vadd.f32 %v321, %v327
      %333 = vst [vmem:[%s275] sm:$0xff] %v329
      %334 = vst [vmem:[%s275 + $0x8] sm:$0xff] %v330
      %335 = vst [vmem:[%s275 + $0x10] sm:$0xff] %v331
      %336 = vst [vmem:[%s275 + $0x18] sm:$0xff] %v332
      %s337 = smul.u32 4, %s17
      %p338 = scmp.lt.s32.totalorder %s337, 7
      %s339 = scalar_select %p338, %s337, 7
      %s340 = smul.addr %s339, 8
      %s341 = scalar_lea.vmem %s6, %s340
      // Predicated region
      $region45: #{basic_block_2.13} parent=43 // pred_check
        %p342 = pneg %p171
      $region46: #{basic_block_2.13} parent=43 // pred_check_branch
        %344 = sbr.rel (%p342) target = $region48
      $region47: #{basic_block_2.13} parent=43 // pred_region
        %s345 = smul.u32 4, %s17
      $region48: #{basic_block_2.13} parent=43 // pred_fallthru
        _
    $region44: #{basic_block_2.13} parent=5 // pred_fallthru
      _
    %p346 = scmp.le.s32.totalorder 2, %s12
    // Predicated region
    $region49: #{basic_block_2.13} parent=5 // pred_check
      %p347 = pneg %p346
    $region50: #{basic_block_2.13} parent=5 // pred_check_branch
      %349 = sbr.rel (%p347) target = $region52
    $region51: #{basic_block_2.13} parent=5 // pred_region
      %s350 = ssub.s32 %s12, 2
      // Predicated region
      $region53: #{basic_block_2.13} parent=51 // pred_check
        %p351 = pneg %p177
      $region54: #{basic_block_2.13} parent=51 // pred_check_branch
        %353 = sbr.rel (%p351) target = $region56
      $region55: #{basic_block_2.13} parent=51 // pred_region
        %s354 = smul.u32 4, %s18
        %p355 = scmp.lt.s32.totalorder %s354, 7
        %s356 = scalar_select %p355, %s354, 7
        %s357 = smul.addr %s356, 8
        %s358 = scalar_lea.vmem %s6, %s357
      $region56: #{basic_block_2.13} parent=51 // pred_fallthru
        _
    $region52: #{basic_block_2.13} parent=5 // pred_fallthru
      _
  $region6: #{basic_block_2.13} parent=0 // loop_footer
    %s16 = sadd.s32 1, %s12
  $region7: #{basic_block_2.13} parent=0 // loop_footer_branch
    %11 = sbr.rel target = $region3
  $region8: #{basic_block_2.13} parent=0 // loop_exit
    _

</llo_original>
